<compile_context>
chip_gen: v6e
topology: v6e:2x2x1
jax: 0.10.0
libtpu: 0.0.40
codegen_flags: <defaults>
</compile_context>

<pallas_src>
import jax
import jax.numpy as jnp
from jax import lax
from jax.experimental import pallas as pl
from jax.experimental.pallas import tpu as pltpu  # noqa: F401  (TPU backend import)

# ---------------- model hyper-parameters (small, synthetic) ----------------
VOCAB = 50          # vocab_size
EMB = 8             # embedding_dim
TPC = 2             # tokens_per_change
HIDDEN = 32         # hidden_dim
ATOMIC = 16         # atomic_dim
LABELS = 5          # labels_set_size
PAD_IDX = 0         # padding_idx
B = 2               # batch
T = 16              # tokens per sequence (multiple of TPC)
S = T // TPC        # GRU sequence length
G = TPC * EMB       # fc1 input size


# ------------------------------- Pallas kernel ------------------------------
def _attn_bigru_kernel(
    xdb_ref,          # (S*Bp, 2G)  rows: time-major; cols [x(t) | x(S-1-t)]
    vmask_ref,        # (S*Bp, 2H)  1.0 where valid: cols [fwd valid@t | bwd valid@S-1-t]
    amask_ref,        # (1, S)      additive attention mask (0 / -1e30 past batch max len)
    win_ref, bin_ref,                 # fused fc1+input proj, block-diag (2G, 6H), (1, 6H)
    whh_ref, bhh_ref,                 # block-diag hidden proj (2H, 6H), (1, 6H)
    watt2_ref, batt_ref,              # attention: (2H, 2) block-diag column split, (1, 1)
    w2_ref, b2_ref,                   # fc2
    wout_ref, bout_ref,               # output projection
    out_ref,                          # (Bp, LABELS)
):
    Bp = out_ref.shape[0]
    H = w2_ref.shape[1]
    Sdim = xdb_ref.shape[0] // Bp

    xdb = xdb_ref[...]                                # (S*Bp, 2G)
    vmask = vmask_ref[...]                            # (S*Bp, 2H)

    # fused fc1 + fwd|bwd GRU input projections: single MXU pass, 6H output lanes.
    # column layout: [r_f r_b z_f z_b n_f n_b]
    xi = jnp.dot(xdb, win_ref[...], preferred_element_type=jnp.float32) + bin_ref[...]

    whh = whh_ref[...]                                # (2H, 6H) block-diagonal
    bhh = bhh_ref[...]                                # (1, 6H)

    # Fused, fully unrolled fwd/bwd recurrence; carry is the joint [h_f | h_b].
    h = jnp.zeros((Bp, 2 * H), jnp.float32)
    g_cols = []                                       # per step: masked [gf(t) | gb(S-1-t)]
    for i in range(Sdim):
        xi_t = xi[i * Bp:(i + 1) * Bp, :]             # (Bp, 6H) static tile slice
        vm_t = vmask[i * Bp:(i + 1) * Bp, :]          # (Bp, 2H)

        # one block-diagonal hidden matmul for both directions
        hh = jnp.dot(h, whh, preferred_element_type=jnp.float32) + bhh   # (Bp, 6H)
        # one sigmoid over a full 128-lane tile, one tanh over 2H lanes
        rz = jax.nn.sigmoid(xi_t[:, 0:4 * H] + hh[:, 0:4 * H])           # (Bp, 4H)
        r = rz[:, 0:2 * H]                            # [r_f | r_b], matches h layout
        z = rz[:, 2 * H:4 * H]                        # [z_f | z_b]
        n = jnp.tanh(xi_t[:, 4 * H:6 * H] + r * hh[:, 4 * H:6 * H])      # (Bp, 2H)
        h_new = (1.0 - z) * n + z * h

        valid = vm_t > 0.5
        g_t = jnp.where(valid, h_new, 0.0)            # zero outputs past each length
        h = jnp.where(valid, h_new, h)                # freeze carry past length
        g_cols.append(g_t)

    # ----- attention (entirely off the recurrence critical path) -----
    # stacked logit matmul: row i*Bp+b -> (lf(b, i), lb(b, S-1-i))
    g_stack = jnp.concatenate(g_cols, axis=0)                              # (S*Bp, 2H)
    l2 = jnp.dot(g_stack, watt2_ref[...], preferred_element_type=jnp.float32)  # (S*Bp, 2)

    # rearrange to (Bp, S) with a cheap one-hot lane combine (avoids a sublane<->lane
    # relayout); VPU work, not on the serial chain.
    tlane = lax.broadcasted_iota(jnp.int32, (1, Sdim), 1)
    logits = jnp.zeros((Bp, Sdim), jnp.float32)
    for i in range(Sdim):
        lf = l2[i * Bp:(i + 1) * Bp, 0:1]             # fwd logit at time i
        lb = l2[i * Bp:(i + 1) * Bp, 1:2]             # bwd logit at time S-1-i
        logits = (logits
                  + lf * (tlane == i).astype(jnp.float32)
                  + lb * (tlane == (Sdim - 1 - i)).astype(jnp.float32))

    logits = logits + batt_ref[...] + amask_ref[...]                       # (Bp, S)
    m = jnp.max(logits, axis=-1, keepdims=True)
    e = jnp.exp(logits - m)
    denom = jnp.sum(e, axis=-1, keepdims=True)
    w_att = e * pl.reciprocal(denom, approx=True)                          # (Bp, S)

    # attention pooling: unrolled multiply-accumulate, never materializing (S, 2H)
    hidden_f = jnp.zeros((Bp, H), jnp.float32)
    hidden_b = jnp.zeros((Bp, H), jnp.float32)
    for i in range(Sdim):
        hidden_f = hidden_f + w_att[:, i:i + 1] * g_cols[i][:, 0:H]                 # time i
        hidden_b = hidden_b + w_att[:, Sdim - 1 - i:Sdim - i] * g_cols[i][:, H:2 * H]  # time S-1-i

    # fc2 + ReLU with w2 split so the [hidden_f | hidden_b] concat is avoided
    w2 = w2_ref[...]
    h2 = (jnp.dot(hidden_f, w2[0:H, :], preferred_element_type=jnp.float32)
          + jnp.dot(hidden_b, w2[H:2 * H, :], preferred_element_type=jnp.float32)
          + b2_ref[...])
    h2 = jnp.maximum(h2, 0.0)

    out_ref[...] = (jnp.dot(h2, wout_ref[...], preferred_element_type=jnp.float32)
                    + bout_ref[...])


# --------------------------- one-time weight fusion ---------------------------
def prepare_weights(params):
    """Fold fc1 into the GRU input projection, build block-diagonal fwd/bwd weights
    and reorder gate columns to [r_f r_b z_f z_b n_f n_b]. Called once at init."""
    H = HIDDEN

    def reorder(mf, mb):  # mf, mb: (..., 3H) in PyTorch [r z n] order
        return jnp.concatenate([mf[:, 0:H], mb[:, 0:H],
                                mf[:, H:2 * H], mb[:, H:2 * H],
                                mf[:, 2 * H:3 * H], mb[:, 2 * H:3 * H]], axis=1)

    # fc1 fused into the input projection (dropout = identity in eval mode)
    wf = params["w1"] @ params["wih_f"]                    # (G, 3H)
    wb = params["w1"] @ params["wih_b"]                    # (G, 3H)
    zg = jnp.zeros_like(wf)
    win_bd = reorder(jnp.concatenate([wf, zg], axis=0),
                     jnp.concatenate([zg, wb], axis=0))    # (2G, 6H)
    bin_f = params["b1"] @ params["wih_f"] + params["bih_f"]
    bin_b = params["b1"] @ params["wih_b"] + params["bih_b"]
    bin_cat = reorder(bin_f, bin_b)                        # (1, 6H)

    zh = jnp.zeros_like(params["whh_f"])
    whh_bd = reorder(jnp.concatenate([params["whh_f"], zh], axis=0),
                     jnp.concatenate([zh, params["whh_b"]], axis=0))   # (2H, 6H)
    bhh_cat = reorder(params["bhh_f"], params["bhh_b"])    # (1, 6H)

    z1 = jnp.zeros((H, 1), jnp.float32)
    watt2 = jnp.concatenate(
        [jnp.concatenate([params["watt"][0:H], z1], axis=1),
         jnp.concatenate([z1, params["watt"][H:2 * H]], axis=1)], axis=0)  # (2H, 2)

    return dict(embedding=params["embedding"],
                win_bd=win_bd, bin_cat=bin_cat, whh_bd=whh_bd, bhh_cat=bhh_cat,
                watt2=watt2, batt=params["batt"],
                w2=params["w2"], b2=params["b2"],
                wout=params["wout"], bout=params["bout"])


# ------------------------------- wrapper ------------------------------------
def attention_bigru_forward(tokens, real_lengths, fw):
    # plain-JAX glue: embedding gather + token grouping (dropout = identity, eval mode)
    emb = fw["embedding"][tokens]                                   # (B, T, E)
    bsz, tlen, _ = emb.shape
    seq = tlen // TPC
    x = emb.reshape(bsz, seq, TPC * EMB).astype(jnp.float32)        # (B, S, G)

    # pad batch to a full sublane tile so every per-timestep slice is a whole tile
    bp = ((bsz + 7) // 8) * 8
    pad = bp - bsz
    x_p = jnp.pad(x, ((0, pad), (0, 0), (0, 0)))

    lens = (real_lengths // TPC).astype(jnp.int32)                  # (B,)
    maxlen = jnp.max(lens)
    lens_p = jnp.pad(lens, (0, pad))                                # padded rows: length 0

    # time-major layout; bwd half of the input is the time-reversed sequence so the
    # fused input projection emits fwd@t and bwd@(S-1-t) gates in the same row.
    x_tm = jnp.transpose(x_p, (1, 0, 2))                            # (S, Bp, G)
    x_db = jnp.concatenate([x_tm, x_tm[::-1]], axis=-1).reshape(seq * bp, 2 * TPC * EMB)

    # packed-sequence emulation masks
    tpos = jnp.arange(seq, dtype=jnp.int32)
    vm = (tpos[:, None] < lens_p[None, :]).astype(jnp.float32)      # (S, Bp)
    vm_f = jnp.broadcast_to(vm[:, :, None], (seq, bp, HIDDEN))
    vm_b = jnp.broadcast_to(vm[::-1][:, :, None], (seq, bp, HIDDEN))
    vmask = jnp.concatenate([vm_f, vm_b], axis=-1).reshape(seq * bp, 2 * HIDDEN)
    amask = jnp.where(tpos[None, :] < maxlen, 0.0, -1e30).astype(jnp.float32)   # (1, S)

    # Single kernel invocation (no grid): working set is a few tens of KiB, far below
    # VMEM on any chip, so whole-array blocks and no pipelining is the right call.
    out = pl.pallas_call(
        _attn_bigru_kernel,
        out_shape=jax.ShapeDtypeStruct((bp, LABELS), jnp.float32),
    )(x_db, vmask, amask,
      fw["win_bd"], fw["bin_cat"], fw["whh_bd"], fw["bhh_cat"],
      fw["watt2"], fw["batt"], fw["w2"], fw["b2"], fw["wout"], fw["bout"])

    # torch's .squeeze(0) is a no-op for B > 1; drop the batch padding
    return out[:bsz]


# --------------------------- pure-JAX reference ------------------------------
def reference_forward(tokens, real_lengths, params):
    emb = params["embedding"][tokens]
    bsz, tlen, _ = emb.shape
    seq = tlen // TPC
    x = emb.reshape(bsz, seq, TPC * EMB).astype(jnp.float32)
    lens = real_lengths // TPC
    changes = x @ params["w1"] + params["b1"][0]                    # (B, S, A)

    def run_dir(wih, whh, bih, bhh, reverse):
        xi = changes @ wih + bih[0]                                 # (B, S, 3H)
        outs = jnp.zeros((bsz, seq, HIDDEN), jnp.float32)
        h = jnp.zeros((bsz, HIDDEN), jnp.float32)
        ts = range(seq - 1, -1, -1) if reverse else range(seq)
        for t in ts:
            hh = h @ whh + bhh[0]
            r = jax.nn.sigmoid(xi[:, t, :HIDDEN] + hh[:, :HIDDEN])
            z = jax.nn.sigmoid(xi[:, t, HIDDEN:2 * HIDDEN] + hh[:, HIDDEN:2 * HIDDEN])
            n = jnp.tanh(xi[:, t, 2 * HIDDEN:] + r * hh[:, 2 * HIDDEN:])
            h_new = (1.0 - z) * n + z * h
            valid = (t < lens)[:, None]
            outs = outs.at[:, t, :].set(jnp.where(valid, h_new, 0.0))
            h = jnp.where(valid, h_new, h)
        return outs

    gf = run_dir(params["wih_f"], params["whh_f"], params["bih_f"], params["bhh_f"], False)
    gb = run_dir(params["wih_b"], params["whh_b"], params["bih_b"], params["bhh_b"], True)
    g = jnp.concatenate([gf, gb], axis=-1)                          # (B, S, 2H)
    logits = (g @ params["watt"])[..., 0] + params["batt"][0, 0]
    tpos = jnp.arange(seq)[None, :]
    logits = jnp.where(tpos < jnp.max(lens), logits, -jnp.inf)
    w = jax.nn.softmax(logits, axis=1)
    hidden = jnp.sum(w[..., None] * g, axis=1)
    h2 = jnp.maximum(hidden @ params["w2"] + params["b2"][0], 0.0)
    return h2 @ params["wout"] + params["bout"][0]


# ------------------------------- parameters ----------------------------------
def init_params(key):
    ks = jax.random.split(key, 16)

    def w(k, shape, scale=0.1):
        return jax.random.normal(k, shape, jnp.float32) * scale

    embedding = w(ks[0], (VOCAB, EMB)).at[PAD_IDX].set(0.0)
    return dict(
        embedding=embedding,
        w1=w(ks[1], (G, ATOMIC)), b1=w(ks[2], (1, ATOMIC)),
        wih_f=w(ks[3], (ATOMIC, 3 * HIDDEN)), whh_f=w(ks[4], (HIDDEN, 3 * HIDDEN)),
        bih_f=w(ks[5], (1, 3 * HIDDEN)), bhh_f=w(ks[6], (1, 3 * HIDDEN)),
        wih_b=w(ks[7], (ATOMIC, 3 * HIDDEN)), whh_b=w(ks[8], (HIDDEN, 3 * HIDDEN)),
        bih_b=w(ks[9], (1, 3 * HIDDEN)), bhh_b=w(ks[10], (1, 3 * HIDDEN)),
        watt=w(ks[11], (2 * HIDDEN, 1)), batt=w(ks[12], (1, 1)),
        w2=w(ks[13], (2 * HIDDEN, HIDDEN)), b2=w(ks[14], (1, HIDDEN)),
        wout=w(ks[15], (HIDDEN, LABELS)), bout=jnp.zeros((1, LABELS), jnp.float32),
    )


# ---------------------------------- main --------------------------------------
if __name__ == "__main__":
    key = jax.random.PRNGKey(0)
    pkey, tkey = jax.random.split(key)
    params = init_params(pkey)
    fused = prepare_weights(params)      # one-time weight fusion, outside the per-call path

    tokens = jax.random.randint(tkey, (B, T), 1, VOCAB, dtype=jnp.int32)
    real_lengths = jnp.array([16, 10], dtype=jnp.int32)
    pos = jnp.arange(T)[None, :]
    tokens = jnp.where(pos < real_lengths[:, None], tokens, PAD_IDX)

    fwd = jax.jit(attention_bigru_forward)
    out = fwd(tokens, real_lengths, fused)
    out = jax.block_until_ready(out)

    ref = reference_forward(tokens, real_lengths, params)
    assert out.shape == (B, LABELS), out.shape
    assert jnp.allclose(out, ref, atol=5e-3, rtol=5e-3), (out, ref)
    print("KERNEL_OK")
</pallas_src>

<mosaic_0001>
module attributes {stable_mosaic.version = 11 : i64} {
  func.func @_attn_bigru_kernel(%arg0: memref<64x32xf32, #tpu.memory_space<vmem>>, %arg1: memref<64x64xf32, #tpu.memory_space<vmem>>, %arg2: memref<1x8xf32, #tpu.memory_space<vmem>>, %arg3: memref<32x192xf32, #tpu.memory_space<vmem>>, %arg4: memref<1x192xf32, #tpu.memory_space<vmem>>, %arg5: memref<64x192xf32, #tpu.memory_space<vmem>>, %arg6: memref<1x192xf32, #tpu.memory_space<vmem>>, %arg7: memref<64x2xf32, #tpu.memory_space<vmem>>, %arg8: memref<1x1xf32, #tpu.memory_space<vmem>>, %arg9: memref<64x32xf32, #tpu.memory_space<vmem>>, %arg10: memref<1x32xf32, #tpu.memory_space<vmem>>, %arg11: memref<32x5xf32, #tpu.memory_space<vmem>>, %arg12: memref<1x5xf32, #tpu.memory_space<vmem>>, %arg13: memref<8x5xf32, #tpu.memory_space<vmem>>) attributes {dimension_semantics = [], scalar_prefetch = 0 : i64, scratch_operands = 0 : i64, tpu.core_type = #tpu.core_type<tc>} {
    %c0 = arith.constant 0 : index
    %c0_0 = arith.constant 0 : index
    %0 = vector.load %arg0[%c0, %c0_0] : memref<64x32xf32, #tpu.memory_space<vmem>>, vector<64x32xf32>
    %c0_1 = arith.constant 0 : index
    %c0_2 = arith.constant 0 : index
    %1 = vector.load %arg1[%c0_1, %c0_2] : memref<64x64xf32, #tpu.memory_space<vmem>>, vector<64x64xf32>
    %c0_3 = arith.constant 0 : index
    %c0_4 = arith.constant 0 : index
    %2 = vector.load %arg3[%c0_3, %c0_4] : memref<32x192xf32, #tpu.memory_space<vmem>>, vector<32x192xf32>
    %cst = arith.constant dense<0.000000e+00> : vector<64x192xf32>
    %3 = tpu.matmul %0, %2, %cst {dimension_numbers = #tpu.dot_dimension_numbers<[1], [0], [0], [1], [0, 0, 1, 1], [], []>} : vector<64x32xf32>, vector<32x192xf32>, vector<64x192xf32> -> vector<64x192xf32>
    %c0_5 = arith.constant 0 : index
    %c0_6 = arith.constant 0 : index
    %4 = vector.load %arg4[%c0_5, %c0_6] : memref<1x192xf32, #tpu.memory_space<vmem>>, vector<1x192xf32>
    %5 = vector.broadcast %4 : vector<1x192xf32> to vector<64x192xf32>
    %6 = arith.addf %3, %5 : vector<64x192xf32>
    %c0_7 = arith.constant 0 : index
    %c0_8 = arith.constant 0 : index
    %7 = vector.load %arg5[%c0_7, %c0_8] : memref<64x192xf32, #tpu.memory_space<vmem>>, vector<64x192xf32>
    %c0_9 = arith.constant 0 : index
    %c0_10 = arith.constant 0 : index
    %8 = vector.load %arg6[%c0_9, %c0_10] : memref<1x192xf32, #tpu.memory_space<vmem>>, vector<1x192xf32>
    %cst_11 = arith.constant 0.000000e+00 : f32
    %9 = vector.broadcast %cst_11 : f32 to vector<8x64xf32>
    %10 = vector.extract_strided_slice %6 {offsets = [0, 0], sizes = [8, 192], strides = [1, 1]} : vector<64x192xf32> to vector<8x192xf32>
    %11 = vector.extract_strided_slice %1 {offsets = [0, 0], sizes = [8, 64], strides = [1, 1]} : vector<64x64xf32> to vector<8x64xf32>
    %cst_12 = arith.constant dense<0.000000e+00> : vector<8x192xf32>
    %12 = tpu.matmul %9, %7, %cst_12 {dimension_numbers = #tpu.dot_dimension_numbers<[1], [0], [0], [1], [0, 0, 1, 1], [], []>} : vector<8x64xf32>, vector<64x192xf32>, vector<8x192xf32> -> vector<8x192xf32>
    %13 = vector.broadcast %8 : vector<1x192xf32> to vector<8x192xf32>
    %14 = arith.addf %12, %13 : vector<8x192xf32>
    %15 = vector.extract_strided_slice %10 {offsets = [0, 0], sizes = [8, 128], strides = [1, 1]} : vector<8x192xf32> to vector<8x128xf32>
    %16 = vector.extract_strided_slice %14 {offsets = [0, 0], sizes = [8, 128], strides = [1, 1]} : vector<8x192xf32> to vector<8x128xf32>
    %17 = arith.addf %15, %16 : vector<8x128xf32>
    %18 = arith.negf %17 : vector<8x128xf32>
    %19 = math.exp %18 : vector<8x128xf32>
    %cst_13 = arith.constant 1.000000e+00 : f32
    %20 = vector.broadcast %cst_13 : f32 to vector<8x128xf32>
    %21 = arith.addf %20, %19 : vector<8x128xf32>
    %22 = arith.divf %20, %21 : vector<8x128xf32>
    %23 = vector.extract_strided_slice %22 {offsets = [0, 0], sizes = [8, 64], strides = [1, 1]} : vector<8x128xf32> to vector<8x64xf32>
    %24 = vector.extract_strided_slice %22 {offsets = [0, 64], sizes = [8, 64], strides = [1, 1]} : vector<8x128xf32> to vector<8x64xf32>
    %25 = vector.extract_strided_slice %10 {offsets = [0, 128], sizes = [8, 64], strides = [1, 1]} : vector<8x192xf32> to vector<8x64xf32>
    %26 = vector.extract_strided_slice %14 {offsets = [0, 128], sizes = [8, 64], strides = [1, 1]} : vector<8x192xf32> to vector<8x64xf32>
    %27 = arith.mulf %23, %26 : vector<8x64xf32>
    %28 = arith.addf %25, %27 : vector<8x64xf32>
    %29 = math.tanh %28 : vector<8x64xf32>
    %cst_14 = arith.constant 1.000000e+00 : f32
    %30 = vector.broadcast %cst_14 : f32 to vector<8x64xf32>
    %31 = arith.subf %30, %24 : vector<8x64xf32>
    %32 = arith.mulf %31, %29 : vector<8x64xf32>
    %33 = arith.mulf %24, %9 : vector<8x64xf32>
    %34 = arith.addf %32, %33 : vector<8x64xf32>
    %cst_15 = arith.constant 5.000000e-01 : f32
    %35 = vector.broadcast %cst_15 : f32 to vector<8x64xf32>
    %36 = arith.cmpf ogt, %11, %35 : vector<8x64xf32>
    %cst_16 = arith.constant 0.000000e+00 : f32
    %37 = vector.broadcast %cst_16 : f32 to vector<8x64xf32>
    %38 = arith.select %36, %34, %37 : vector<8x64xi1>, vector<8x64xf32>
    %39 = arith.select %36, %34, %9 : vector<8x64xi1>, vector<8x64xf32>
    %40 = vector.extract_strided_slice %6 {offsets = [8, 0], sizes = [8, 192], strides = [1, 1]} : vector<64x192xf32> to vector<8x192xf32>
    %41 = vector.extract_strided_slice %1 {offsets = [8, 0], sizes = [8, 64], strides = [1, 1]} : vector<64x64xf32> to vector<8x64xf32>
    %cst_17 = arith.constant dense<0.000000e+00> : vector<8x192xf32>
    %42 = tpu.matmul %39, %7, %cst_17 {dimension_numbers = #tpu.dot_dimension_numbers<[1], [0], [0], [1], [0, 0, 1, 1], [], []>} : vector<8x64xf32>, vector<64x192xf32>, vector<8x192xf32> -> vector<8x192xf32>
    %43 = vector.broadcast %8 : vector<1x192xf32> to vector<8x192xf32>
    %44 = arith.addf %42, %43 : vector<8x192xf32>
    %45 = vector.extract_strided_slice %40 {offsets = [0, 0], sizes = [8, 128], strides = [1, 1]} : vector<8x192xf32> to vector<8x128xf32>
    %46 = vector.extract_strided_slice %44 {offsets = [0, 0], sizes = [8, 128], strides = [1, 1]} : vector<8x192xf32> to vector<8x128xf32>
    %47 = arith.addf %45, %46 : vector<8x128xf32>
    %48 = arith.negf %47 : vector<8x128xf32>
    %49 = math.exp %48 : vector<8x128xf32>
    %cst_18 = arith.constant 1.000000e+00 : f32
    %50 = vector.broadcast %cst_18 : f32 to vector<8x128xf32>
    %51 = arith.addf %50, %49 : vector<8x128xf32>
    %52 = arith.divf %50, %51 : vector<8x128xf32>
    %53 = vector.extract_strided_slice %52 {offsets = [0, 0], sizes = [8, 64], strides = [1, 1]} : vector<8x128xf32> to vector<8x64xf32>
    %54 = vector.extract_strided_slice %52 {offsets = [0, 64], sizes = [8, 64], strides = [1, 1]} : vector<8x128xf32> to vector<8x64xf32>
    %55 = vector.extract_strided_slice %40 {offsets = [0, 128], sizes = [8, 64], strides = [1, 1]} : vector<8x192xf32> to vector<8x64xf32>
    %56 = vector.extract_strided_slice %44 {offsets = [0, 128], sizes = [8, 64], strides = [1, 1]} : vector<8x192xf32> to vector<8x64xf32>
    %57 = arith.mulf %53, %56 : vector<8x64xf32>
    %58 = arith.addf %55, %57 : vector<8x64xf32>
    %59 = math.tanh %58 : vector<8x64xf32>
    %cst_19 = arith.constant 1.000000e+00 : f32
    %60 = vector.broadcast %cst_19 : f32 to vector<8x64xf32>
    %61 = arith.subf %60, %54 : vector<8x64xf32>
    %62 = arith.mulf %61, %59 : vector<8x64xf32>
    %63 = arith.mulf %54, %39 : vector<8x64xf32>
    %64 = arith.addf %62, %63 : vector<8x64xf32>
    %cst_20 = arith.constant 5.000000e-01 : f32
    %65 = vector.broadcast %cst_20 : f32 to vector<8x64xf32>
    %66 = arith.cmpf ogt, %41, %65 : vector<8x64xf32>
    %cst_21 = arith.constant 0.000000e+00 : f32
    %67 = vector.broadcast %cst_21 : f32 to vector<8x64xf32>
    %68 = arith.select %66, %64, %67 : vector<8x64xi1>, vector<8x64xf32>
    %69 = arith.select %66, %64, %39 : vector<8x64xi1>, vector<8x64xf32>
    %70 = vector.extract_strided_slice %6 {offsets = [16, 0], sizes = [8, 192], strides = [1, 1]} : vector<64x192xf32> to vector<8x192xf32>
    %71 = vector.extract_strided_slice %1 {offsets = [16, 0], sizes = [8, 64], strides = [1, 1]} : vector<64x64xf32> to vector<8x64xf32>
    %cst_22 = arith.constant dense<0.000000e+00> : vector<8x192xf32>
    %72 = tpu.matmul %69, %7, %cst_22 {dimension_numbers = #tpu.dot_dimension_numbers<[1], [0], [0], [1], [0, 0, 1, 1], [], []>} : vector<8x64xf32>, vector<64x192xf32>, vector<8x192xf32> -> vector<8x192xf32>
    %73 = vector.broadcast %8 : vector<1x192xf32> to vector<8x192xf32>
    %74 = arith.addf %72, %73 : vector<8x192xf32>
    %75 = vector.extract_strided_slice %70 {offsets = [0, 0], sizes = [8, 128], strides = [1, 1]} : vector<8x192xf32> to vector<8x128xf32>
    %76 = vector.extract_strided_slice %74 {offsets = [0, 0], sizes = [8, 128], strides = [1, 1]} : vector<8x192xf32> to vector<8x128xf32>
    %77 = arith.addf %75, %76 : vector<8x128xf32>
    %78 = arith.negf %77 : vector<8x128xf32>
    %79 = math.exp %78 : vector<8x128xf32>
    %cst_23 = arith.constant 1.000000e+00 : f32
    %80 = vector.broadcast %cst_23 : f32 to vector<8x128xf32>
    %81 = arith.addf %80, %79 : vector<8x128xf32>
    %82 = arith.divf %80, %81 : vector<8x128xf32>
    %83 = vector.extract_strided_slice %82 {offsets = [0, 0], sizes = [8, 64], strides = [1, 1]} : vector<8x128xf32> to vector<8x64xf32>
    %84 = vector.extract_strided_slice %82 {offsets = [0, 64], sizes = [8, 64], strides = [1, 1]} : vector<8x128xf32> to vector<8x64xf32>
    %85 = vector.extract_strided_slice %70 {offsets = [0, 128], sizes = [8, 64], strides = [1, 1]} : vector<8x192xf32> to vector<8x64xf32>
    %86 = vector.extract_strided_slice %74 {offsets = [0, 128], sizes = [8, 64], strides = [1, 1]} : vector<8x192xf32> to vector<8x64xf32>
    %87 = arith.mulf %83, %86 : vector<8x64xf32>
    %88 = arith.addf %85, %87 : vector<8x64xf32>
    %89 = math.tanh %88 : vector<8x64xf32>
    %cst_24 = arith.constant 1.000000e+00 : f32
    %90 = vector.broadcast %cst_24 : f32 to vector<8x64xf32>
    %91 = arith.subf %90, %84 : vector<8x64xf32>
    %92 = arith.mulf %91, %89 : vector<8x64xf32>
    %93 = arith.mulf %84, %69 : vector<8x64xf32>
    %94 = arith.addf %92, %93 : vector<8x64xf32>
    %cst_25 = arith.constant 5.000000e-01 : f32
    %95 = vector.broadcast %cst_25 : f32 to vector<8x64xf32>
    %96 = arith.cmpf ogt, %71, %95 : vector<8x64xf32>
    %cst_26 = arith.constant 0.000000e+00 : f32
    %97 = vector.broadcast %cst_26 : f32 to vector<8x64xf32>
    %98 = arith.select %96, %94, %97 : vector<8x64xi1>, vector<8x64xf32>
    %99 = arith.select %96, %94, %69 : vector<8x64xi1>, vector<8x64xf32>
    %100 = vector.extract_strided_slice %6 {offsets = [24, 0], sizes = [8, 192], strides = [1, 1]} : vector<64x192xf32> to vector<8x192xf32>
    %101 = vector.extract_strided_slice %1 {offsets = [24, 0], sizes = [8, 64], strides = [1, 1]} : vector<64x64xf32> to vector<8x64xf32>
    %cst_27 = arith.constant dense<0.000000e+00> : vector<8x192xf32>
    %102 = tpu.matmul %99, %7, %cst_27 {dimension_numbers = #tpu.dot_dimension_numbers<[1], [0], [0], [1], [0, 0, 1, 1], [], []>} : vector<8x64xf32>, vector<64x192xf32>, vector<8x192xf32> -> vector<8x192xf32>
    %103 = vector.broadcast %8 : vector<1x192xf32> to vector<8x192xf32>
    %104 = arith.addf %102, %103 : vector<8x192xf32>
    %105 = vector.extract_strided_slice %100 {offsets = [0, 0], sizes = [8, 128], strides = [1, 1]} : vector<8x192xf32> to vector<8x128xf32>
    %106 = vector.extract_strided_slice %104 {offsets = [0, 0], sizes = [8, 128], strides = [1, 1]} : vector<8x192xf32> to vector<8x128xf32>
    %107 = arith.addf %105, %106 : vector<8x128xf32>
    %108 = arith.negf %107 : vector<8x128xf32>
    %109 = math.exp %108 : vector<8x128xf32>
    %cst_28 = arith.constant 1.000000e+00 : f32
    %110 = vector.broadcast %cst_28 : f32 to vector<8x128xf32>
    %111 = arith.addf %110, %109 : vector<8x128xf32>
    %112 = arith.divf %110, %111 : vector<8x128xf32>
    %113 = vector.extract_strided_slice %112 {offsets = [0, 0], sizes = [8, 64], strides = [1, 1]} : vector<8x128xf32> to vector<8x64xf32>
    %114 = vector.extract_strided_slice %112 {offsets = [0, 64], sizes = [8, 64], strides = [1, 1]} : vector<8x128xf32> to vector<8x64xf32>
    %115 = vector.extract_strided_slice %100 {offsets = [0, 128], sizes = [8, 64], strides = [1, 1]} : vector<8x192xf32> to vector<8x64xf32>
    %116 = vector.extract_strided_slice %104 {offsets = [0, 128], sizes = [8, 64], strides = [1, 1]} : vector<8x192xf32> to vector<8x64xf32>
    %117 = arith.mulf %113, %116 : vector<8x64xf32>
    %118 = arith.addf %115, %117 : vector<8x64xf32>
    %119 = math.tanh %118 : vector<8x64xf32>
    %cst_29 = arith.constant 1.000000e+00 : f32
    %120 = vector.broadcast %cst_29 : f32 to vector<8x64xf32>
    %121 = arith.subf %120, %114 : vector<8x64xf32>
    %122 = arith.mulf %121, %119 : vector<8x64xf32>
    %123 = arith.mulf %114, %99 : vector<8x64xf32>
    %124 = arith.addf %122, %123 : vector<8x64xf32>
    %cst_30 = arith.constant 5.000000e-01 : f32
    %125 = vector.broadcast %cst_30 : f32 to vector<8x64xf32>
    %126 = arith.cmpf ogt, %101, %125 : vector<8x64xf32>
    %cst_31 = arith.constant 0.000000e+00 : f32
    %127 = vector.broadcast %cst_31 : f32 to vector<8x64xf32>
    %128 = arith.select %126, %124, %127 : vector<8x64xi1>, vector<8x64xf32>
    %129 = arith.select %126, %124, %99 : vector<8x64xi1>, vector<8x64xf32>
    %130 = vector.extract_strided_slice %6 {offsets = [32, 0], sizes = [8, 192], strides = [1, 1]} : vector<64x192xf32> to vector<8x192xf32>
    %131 = vector.extract_strided_slice %1 {offsets = [32, 0], sizes = [8, 64], strides = [1, 1]} : vector<64x64xf32> to vector<8x64xf32>
    %cst_32 = arith.constant dense<0.000000e+00> : vector<8x192xf32>
    %132 = tpu.matmul %129, %7, %cst_32 {dimension_numbers = #tpu.dot_dimension_numbers<[1], [0], [0], [1], [0, 0, 1, 1], [], []>} : vector<8x64xf32>, vector<64x192xf32>, vector<8x192xf32> -> vector<8x192xf32>
    %133 = vector.broadcast %8 : vector<1x192xf32> to vector<8x192xf32>
    %134 = arith.addf %132, %133 : vector<8x192xf32>
    %135 = vector.extract_strided_slice %130 {offsets = [0, 0], sizes = [8, 128], strides = [1, 1]} : vector<8x192xf32> to vector<8x128xf32>
    %136 = vector.extract_strided_slice %134 {offsets = [0, 0], sizes = [8, 128], strides = [1, 1]} : vector<8x192xf32> to vector<8x128xf32>
    %137 = arith.addf %135, %136 : vector<8x128xf32>
    %138 = arith.negf %137 : vector<8x128xf32>
    %139 = math.exp %138 : vector<8x128xf32>
    %cst_33 = arith.constant 1.000000e+00 : f32
    %140 = vector.broadcast %cst_33 : f32 to vector<8x128xf32>
    %141 = arith.addf %140, %139 : vector<8x128xf32>
    %142 = arith.divf %140, %141 : vector<8x128xf32>
    %143 = vector.extract_strided_slice %142 {offsets = [0, 0], sizes = [8, 64], strides = [1, 1]} : vector<8x128xf32> to vector<8x64xf32>
    %144 = vector.extract_strided_slice %142 {offsets = [0, 64], sizes = [8, 64], strides = [1, 1]} : vector<8x128xf32> to vector<8x64xf32>
    %145 = vector.extract_strided_slice %130 {offsets = [0, 128], sizes = [8, 64], strides = [1, 1]} : vector<8x192xf32> to vector<8x64xf32>
    %146 = vector.extract_strided_slice %134 {offsets = [0, 128], sizes = [8, 64], strides = [1, 1]} : vector<8x192xf32> to vector<8x64xf32>
    %147 = arith.mulf %143, %146 : vector<8x64xf32>
    %148 = arith.addf %145, %147 : vector<8x64xf32>
    %149 = math.tanh %148 : vector<8x64xf32>
    %cst_34 = arith.constant 1.000000e+00 : f32
    %150 = vector.broadcast %cst_34 : f32 to vector<8x64xf32>
    %151 = arith.subf %150, %144 : vector<8x64xf32>
    %152 = arith.mulf %151, %149 : vector<8x64xf32>
    %153 = arith.mulf %144, %129 : vector<8x64xf32>
    %154 = arith.addf %152, %153 : vector<8x64xf32>
    %cst_35 = arith.constant 5.000000e-01 : f32
    %155 = vector.broadcast %cst_35 : f32 to vector<8x64xf32>
    %156 = arith.cmpf ogt, %131, %155 : vector<8x64xf32>
    %cst_36 = arith.constant 0.000000e+00 : f32
    %157 = vector.broadcast %cst_36 : f32 to vector<8x64xf32>
    %158 = arith.select %156, %154, %157 : vector<8x64xi1>, vector<8x64xf32>
    %159 = arith.select %156, %154, %129 : vector<8x64xi1>, vector<8x64xf32>
    %160 = vector.extract_strided_slice %6 {offsets = [40, 0], sizes = [8, 192], strides = [1, 1]} : vector<64x192xf32> to vector<8x192xf32>
    %161 = vector.extract_strided_slice %1 {offsets = [40, 0], sizes = [8, 64], strides = [1, 1]} : vector<64x64xf32> to vector<8x64xf32>
    %cst_37 = arith.constant dense<0.000000e+00> : vector<8x192xf32>
    %162 = tpu.matmul %159, %7, %cst_37 {dimension_numbers = #tpu.dot_dimension_numbers<[1], [0], [0], [1], [0, 0, 1, 1], [], []>} : vector<8x64xf32>, vector<64x192xf32>, vector<8x192xf32> -> vector<8x192xf32>
    %163 = vector.broadcast %8 : vector<1x192xf32> to vector<8x192xf32>
    %164 = arith.addf %162, %163 : vector<8x192xf32>
    %165 = vector.extract_strided_slice %160 {offsets = [0, 0], sizes = [8, 128], strides = [1, 1]} : vector<8x192xf32> to vector<8x128xf32>
    %166 = vector.extract_strided_slice %164 {offsets = [0, 0], sizes = [8, 128], strides = [1, 1]} : vector<8x192xf32> to vector<8x128xf32>
    %167 = arith.addf %165, %166 : vector<8x128xf32>
    %168 = arith.negf %167 : vector<8x128xf32>
    %169 = math.exp %168 : vector<8x128xf32>
    %cst_38 = arith.constant 1.000000e+00 : f32
    %170 = vector.broadcast %cst_38 : f32 to vector<8x128xf32>
    %171 = arith.addf %170, %169 : vector<8x128xf32>
    %172 = arith.divf %170, %171 : vector<8x128xf32>
    %173 = vector.extract_strided_slice %172 {offsets = [0, 0], sizes = [8, 64], strides = [1, 1]} : vector<8x128xf32> to vector<8x64xf32>
    %174 = vector.extract_strided_slice %172 {offsets = [0, 64], sizes = [8, 64], strides = [1, 1]} : vector<8x128xf32> to vector<8x64xf32>
    %175 = vector.extract_strided_slice %160 {offsets = [0, 128], sizes = [8, 64], strides = [1, 1]} : vector<8x192xf32> to vector<8x64xf32>
    %176 = vector.extract_strided_slice %164 {offsets = [0, 128], sizes = [8, 64], strides = [1, 1]} : vector<8x192xf32> to vector<8x64xf32>
    %177 = arith.mulf %173, %176 : vector<8x64xf32>
    %178 = arith.addf %175, %177 : vector<8x64xf32>
    %179 = math.tanh %178 : vector<8x64xf32>
    %cst_39 = arith.constant 1.000000e+00 : f32
    %180 = vector.broadcast %cst_39 : f32 to vector<8x64xf32>
    %181 = arith.subf %180, %174 : vector<8x64xf32>
    %182 = arith.mulf %181, %179 : vector<8x64xf32>
    %183 = arith.mulf %174, %159 : vector<8x64xf32>
    %184 = arith.addf %182, %183 : vector<8x64xf32>
    %cst_40 = arith.constant 5.000000e-01 : f32
    %185 = vector.broadcast %cst_40 : f32 to vector<8x64xf32>
    %186 = arith.cmpf ogt, %161, %185 : vector<8x64xf32>
    %cst_41 = arith.constant 0.000000e+00 : f32
    %187 = vector.broadcast %cst_41 : f32 to vector<8x64xf32>
    %188 = arith.select %186, %184, %187 : vector<8x64xi1>, vector<8x64xf32>
    %189 = arith.select %186, %184, %159 : vector<8x64xi1>, vector<8x64xf32>
    %190 = vector.extract_strided_slice %6 {offsets = [48, 0], sizes = [8, 192], strides = [1, 1]} : vector<64x192xf32> to vector<8x192xf32>
    %191 = vector.extract_strided_slice %1 {offsets = [48, 0], sizes = [8, 64], strides = [1, 1]} : vector<64x64xf32> to vector<8x64xf32>
    %cst_42 = arith.constant dense<0.000000e+00> : vector<8x192xf32>
    %192 = tpu.matmul %189, %7, %cst_42 {dimension_numbers = #tpu.dot_dimension_numbers<[1], [0], [0], [1], [0, 0, 1, 1], [], []>} : vector<8x64xf32>, vector<64x192xf32>, vector<8x192xf32> -> vector<8x192xf32>
    %193 = vector.broadcast %8 : vector<1x192xf32> to vector<8x192xf32>
    %194 = arith.addf %192, %193 : vector<8x192xf32>
    %195 = vector.extract_strided_slice %190 {offsets = [0, 0], sizes = [8, 128], strides = [1, 1]} : vector<8x192xf32> to vector<8x128xf32>
    %196 = vector.extract_strided_slice %194 {offsets = [0, 0], sizes = [8, 128], strides = [1, 1]} : vector<8x192xf32> to vector<8x128xf32>
    %197 = arith.addf %195, %196 : vector<8x128xf32>
    %198 = arith.negf %197 : vector<8x128xf32>
    %199 = math.exp %198 : vector<8x128xf32>
    %cst_43 = arith.constant 1.000000e+00 : f32
    %200 = vector.broadcast %cst_43 : f32 to vector<8x128xf32>
    %201 = arith.addf %200, %199 : vector<8x128xf32>
    %202 = arith.divf %200, %201 : vector<8x128xf32>
    %203 = vector.extract_strided_slice %202 {offsets = [0, 0], sizes = [8, 64], strides = [1, 1]} : vector<8x128xf32> to vector<8x64xf32>
    %204 = vector.extract_strided_slice %202 {offsets = [0, 64], sizes = [8, 64], strides = [1, 1]} : vector<8x128xf32> to vector<8x64xf32>
    %205 = vector.extract_strided_slice %190 {offsets = [0, 128], sizes = [8, 64], strides = [1, 1]} : vector<8x192xf32> to vector<8x64xf32>
    %206 = vector.extract_strided_slice %194 {offsets = [0, 128], sizes = [8, 64], strides = [1, 1]} : vector<8x192xf32> to vector<8x64xf32>
    %207 = arith.mulf %203, %206 : vector<8x64xf32>
    %208 = arith.addf %205, %207 : vector<8x64xf32>
    %209 = math.tanh %208 : vector<8x64xf32>
    %cst_44 = arith.constant 1.000000e+00 : f32
    %210 = vector.broadcast %cst_44 : f32 to vector<8x64xf32>
    %211 = arith.subf %210, %204 : vector<8x64xf32>
    %212 = arith.mulf %211, %209 : vector<8x64xf32>
    %213 = arith.mulf %204, %189 : vector<8x64xf32>
    %214 = arith.addf %212, %213 : vector<8x64xf32>
    %cst_45 = arith.constant 5.000000e-01 : f32
    %215 = vector.broadcast %cst_45 : f32 to vector<8x64xf32>
    %216 = arith.cmpf ogt, %191, %215 : vector<8x64xf32>
    %cst_46 = arith.constant 0.000000e+00 : f32
    %217 = vector.broadcast %cst_46 : f32 to vector<8x64xf32>
    %218 = arith.select %216, %214, %217 : vector<8x64xi1>, vector<8x64xf32>
    %219 = arith.select %216, %214, %189 : vector<8x64xi1>, vector<8x64xf32>
    %220 = vector.extract_strided_slice %6 {offsets = [56, 0], sizes = [8, 192], strides = [1, 1]} : vector<64x192xf32> to vector<8x192xf32>
    %221 = vector.extract_strided_slice %1 {offsets = [56, 0], sizes = [8, 64], strides = [1, 1]} : vector<64x64xf32> to vector<8x64xf32>
    %cst_47 = arith.constant dense<0.000000e+00> : vector<8x192xf32>
    %222 = tpu.matmul %219, %7, %cst_47 {dimension_numbers = #tpu.dot_dimension_numbers<[1], [0], [0], [1], [0, 0, 1, 1], [], []>} : vector<8x64xf32>, vector<64x192xf32>, vector<8x192xf32> -> vector<8x192xf32>
    %223 = vector.broadcast %8 : vector<1x192xf32> to vector<8x192xf32>
    %224 = arith.addf %222, %223 : vector<8x192xf32>
    %225 = vector.extract_strided_slice %220 {offsets = [0, 0], sizes = [8, 128], strides = [1, 1]} : vector<8x192xf32> to vector<8x128xf32>
    %226 = vector.extract_strided_slice %224 {offsets = [0, 0], sizes = [8, 128], strides = [1, 1]} : vector<8x192xf32> to vector<8x128xf32>
    %227 = arith.addf %225, %226 : vector<8x128xf32>
    %228 = arith.negf %227 : vector<8x128xf32>
    %229 = math.exp %228 : vector<8x128xf32>
    %cst_48 = arith.constant 1.000000e+00 : f32
    %230 = vector.broadcast %cst_48 : f32 to vector<8x128xf32>
    %231 = arith.addf %230, %229 : vector<8x128xf32>
    %232 = arith.divf %230, %231 : vector<8x128xf32>
    %233 = vector.extract_strided_slice %232 {offsets = [0, 0], sizes = [8, 64], strides = [1, 1]} : vector<8x128xf32> to vector<8x64xf32>
    %234 = vector.extract_strided_slice %232 {offsets = [0, 64], sizes = [8, 64], strides = [1, 1]} : vector<8x128xf32> to vector<8x64xf32>
    %235 = vector.extract_strided_slice %220 {offsets = [0, 128], sizes = [8, 64], strides = [1, 1]} : vector<8x192xf32> to vector<8x64xf32>
    %236 = vector.extract_strided_slice %224 {offsets = [0, 128], sizes = [8, 64], strides = [1, 1]} : vector<8x192xf32> to vector<8x64xf32>
    %237 = arith.mulf %233, %236 : vector<8x64xf32>
    %238 = arith.addf %235, %237 : vector<8x64xf32>
    %239 = math.tanh %238 : vector<8x64xf32>
    %cst_49 = arith.constant 1.000000e+00 : f32
    %240 = vector.broadcast %cst_49 : f32 to vector<8x64xf32>
    %241 = arith.subf %240, %234 : vector<8x64xf32>
    %242 = arith.mulf %241, %239 : vector<8x64xf32>
    %243 = arith.mulf %234, %219 : vector<8x64xf32>
    %244 = arith.addf %242, %243 : vector<8x64xf32>
    %cst_50 = arith.constant 5.000000e-01 : f32
    %245 = vector.broadcast %cst_50 : f32 to vector<8x64xf32>
    %246 = arith.cmpf ogt, %221, %245 : vector<8x64xf32>
    %cst_51 = arith.constant 0.000000e+00 : f32
    %247 = vector.broadcast %cst_51 : f32 to vector<8x64xf32>
    %248 = arith.select %246, %244, %247 : vector<8x64xi1>, vector<8x64xf32>
    %249 = tpu.concatenate %38, %68, %98, %128, %158, %188, %218, %248 in 0 : vector<8x64xf32>, vector<8x64xf32>, vector<8x64xf32>, vector<8x64xf32>, vector<8x64xf32>, vector<8x64xf32>, vector<8x64xf32>, vector<8x64xf32> -> vector<64x64xf32>
    %c0_52 = arith.constant 0 : index
    %c0_53 = arith.constant 0 : index
    %250 = vector.load %arg7[%c0_52, %c0_53] : memref<64x2xf32, #tpu.memory_space<vmem>>, vector<64x2xf32>
    %cst_54 = arith.constant dense<0.000000e+00> : vector<64x2xf32>
    %251 = tpu.matmul %249, %250, %cst_54 {dimension_numbers = #tpu.dot_dimension_numbers<[1], [0], [0], [1], [0, 0, 1, 1], [], []>} : vector<64x64xf32>, vector<64x2xf32>, vector<64x2xf32> -> vector<64x2xf32>
    %252 = tpu.iota {dimensions = array<i32: 1>} : vector<1x8xi32>
    %cst_55 = arith.constant 0.000000e+00 : f32
    %253 = vector.broadcast %cst_55 : f32 to vector<8x8xf32>
    %254 = vector.extract_strided_slice %251 {offsets = [0, 0], sizes = [8, 1], strides = [1, 1]} : vector<64x2xf32> to vector<8x1xf32>
    %255 = vector.extract_strided_slice %251 {offsets = [0, 1], sizes = [8, 1], strides = [1, 1]} : vector<64x2xf32> to vector<8x1xf32>
    %c0_i32 = arith.constant 0 : i32
    %256 = vector.broadcast %c0_i32 : i32 to vector<1x8xi32>
    %257 = arith.cmpi eq, %252, %256 : vector<1x8xi32>
    %258 = arith.extui %257 : vector<1x8xi1> to vector<1x8xi32>
    %259 = arith.sitofp %258 : vector<1x8xi32> to vector<1x8xf32>
    %260 = vector.broadcast %254 : vector<8x1xf32> to vector<8x8xf32>
    %261 = vector.broadcast %259 : vector<1x8xf32> to vector<8x8xf32>
    %262 = arith.mulf %260, %261 : vector<8x8xf32>
    %263 = arith.addf %253, %262 : vector<8x8xf32>
    %c7_i32 = arith.constant 7 : i32
    %264 = vector.broadcast %c7_i32 : i32 to vector<1x8xi32>
    %265 = arith.cmpi eq, %252, %264 : vector<1x8xi32>
    %266 = arith.extui %265 : vector<1x8xi1> to vector<1x8xi32>
    %267 = arith.sitofp %266 : vector<1x8xi32> to vector<1x8xf32>
    %268 = vector.broadcast %255 : vector<8x1xf32> to vector<8x8xf32>
    %269 = vector.broadcast %267 : vector<1x8xf32> to vector<8x8xf32>
    %270 = arith.mulf %268, %269 : vector<8x8xf32>
    %271 = arith.addf %263, %270 : vector<8x8xf32>
    %272 = vector.extract_strided_slice %251 {offsets = [8, 0], sizes = [8, 1], strides = [1, 1]} : vector<64x2xf32> to vector<8x1xf32>
    %273 = vector.extract_strided_slice %251 {offsets = [8, 1], sizes = [8, 1], strides = [1, 1]} : vector<64x2xf32> to vector<8x1xf32>
    %c1_i32 = arith.constant 1 : i32
    %274 = vector.broadcast %c1_i32 : i32 to vector<1x8xi32>
    %275 = arith.cmpi eq, %252, %274 : vector<1x8xi32>
    %276 = arith.extui %275 : vector<1x8xi1> to vector<1x8xi32>
    %277 = arith.sitofp %276 : vector<1x8xi32> to vector<1x8xf32>
    %278 = vector.broadcast %272 : vector<8x1xf32> to vector<8x8xf32>
    %279 = vector.broadcast %277 : vector<1x8xf32> to vector<8x8xf32>
    %280 = arith.mulf %278, %279 : vector<8x8xf32>
    %281 = arith.addf %271, %280 : vector<8x8xf32>
    %c6_i32 = arith.constant 6 : i32
    %282 = vector.broadcast %c6_i32 : i32 to vector<1x8xi32>
    %283 = arith.cmpi eq, %252, %282 : vector<1x8xi32>
    %284 = arith.extui %283 : vector<1x8xi1> to vector<1x8xi32>
    %285 = arith.sitofp %284 : vector<1x8xi32> to vector<1x8xf32>
    %286 = vector.broadcast %273 : vector<8x1xf32> to vector<8x8xf32>
    %287 = vector.broadcast %285 : vector<1x8xf32> to vector<8x8xf32>
    %288 = arith.mulf %286, %287 : vector<8x8xf32>
    %289 = arith.addf %281, %288 : vector<8x8xf32>
    %290 = vector.extract_strided_slice %251 {offsets = [16, 0], sizes = [8, 1], strides = [1, 1]} : vector<64x2xf32> to vector<8x1xf32>
    %291 = vector.extract_strided_slice %251 {offsets = [16, 1], sizes = [8, 1], strides = [1, 1]} : vector<64x2xf32> to vector<8x1xf32>
    %c2_i32 = arith.constant 2 : i32
    %292 = vector.broadcast %c2_i32 : i32 to vector<1x8xi32>
    %293 = arith.cmpi eq, %252, %292 : vector<1x8xi32>
    %294 = arith.extui %293 : vector<1x8xi1> to vector<1x8xi32>
    %295 = arith.sitofp %294 : vector<1x8xi32> to vector<1x8xf32>
    %296 = vector.broadcast %290 : vector<8x1xf32> to vector<8x8xf32>
    %297 = vector.broadcast %295 : vector<1x8xf32> to vector<8x8xf32>
    %298 = arith.mulf %296, %297 : vector<8x8xf32>
    %299 = arith.addf %289, %298 : vector<8x8xf32>
    %c5_i32 = arith.constant 5 : i32
    %300 = vector.broadcast %c5_i32 : i32 to vector<1x8xi32>
    %301 = arith.cmpi eq, %252, %300 : vector<1x8xi32>
    %302 = arith.extui %301 : vector<1x8xi1> to vector<1x8xi32>
    %303 = arith.sitofp %302 : vector<1x8xi32> to vector<1x8xf32>
    %304 = vector.broadcast %291 : vector<8x1xf32> to vector<8x8xf32>
    %305 = vector.broadcast %303 : vector<1x8xf32> to vector<8x8xf32>
    %306 = arith.mulf %304, %305 : vector<8x8xf32>
    %307 = arith.addf %299, %306 : vector<8x8xf32>
    %308 = vector.extract_strided_slice %251 {offsets = [24, 0], sizes = [8, 1], strides = [1, 1]} : vector<64x2xf32> to vector<8x1xf32>
    %309 = vector.extract_strided_slice %251 {offsets = [24, 1], sizes = [8, 1], strides = [1, 1]} : vector<64x2xf32> to vector<8x1xf32>
    %c3_i32 = arith.constant 3 : i32
    %310 = vector.broadcast %c3_i32 : i32 to vector<1x8xi32>
    %311 = arith.cmpi eq, %252, %310 : vector<1x8xi32>
    %312 = arith.extui %311 : vector<1x8xi1> to vector<1x8xi32>
    %313 = arith.sitofp %312 : vector<1x8xi32> to vector<1x8xf32>
    %314 = vector.broadcast %308 : vector<8x1xf32> to vector<8x8xf32>
    %315 = vector.broadcast %313 : vector<1x8xf32> to vector<8x8xf32>
    %316 = arith.mulf %314, %315 : vector<8x8xf32>
    %317 = arith.addf %307, %316 : vector<8x8xf32>
    %c4_i32 = arith.constant 4 : i32
    %318 = vector.broadcast %c4_i32 : i32 to vector<1x8xi32>
    %319 = arith.cmpi eq, %252, %318 : vector<1x8xi32>
    %320 = arith.extui %319 : vector<1x8xi1> to vector<1x8xi32>
    %321 = arith.sitofp %320 : vector<1x8xi32> to vector<1x8xf32>
    %322 = vector.broadcast %309 : vector<8x1xf32> to vector<8x8xf32>
    %323 = vector.broadcast %321 : vector<1x8xf32> to vector<8x8xf32>
    %324 = arith.mulf %322, %323 : vector<8x8xf32>
    %325 = arith.addf %317, %324 : vector<8x8xf32>
    %326 = vector.extract_strided_slice %251 {offsets = [32, 0], sizes = [8, 1], strides = [1, 1]} : vector<64x2xf32> to vector<8x1xf32>
    %327 = vector.extract_strided_slice %251 {offsets = [32, 1], sizes = [8, 1], strides = [1, 1]} : vector<64x2xf32> to vector<8x1xf32>
    %c4_i32_56 = arith.constant 4 : i32
    %328 = vector.broadcast %c4_i32_56 : i32 to vector<1x8xi32>
    %329 = arith.cmpi eq, %252, %328 : vector<1x8xi32>
    %330 = arith.extui %329 : vector<1x8xi1> to vector<1x8xi32>
    %331 = arith.sitofp %330 : vector<1x8xi32> to vector<1x8xf32>
    %332 = vector.broadcast %326 : vector<8x1xf32> to vector<8x8xf32>
    %333 = vector.broadcast %331 : vector<1x8xf32> to vector<8x8xf32>
    %334 = arith.mulf %332, %333 : vector<8x8xf32>
    %335 = arith.addf %325, %334 : vector<8x8xf32>
    %c3_i32_57 = arith.constant 3 : i32
    %336 = vector.broadcast %c3_i32_57 : i32 to vector<1x8xi32>
    %337 = arith.cmpi eq, %252, %336 : vector<1x8xi32>
    %338 = arith.extui %337 : vector<1x8xi1> to vector<1x8xi32>
    %339 = arith.sitofp %338 : vector<1x8xi32> to vector<1x8xf32>
    %340 = vector.broadcast %327 : vector<8x1xf32> to vector<8x8xf32>
    %341 = vector.broadcast %339 : vector<1x8xf32> to vector<8x8xf32>
    %342 = arith.mulf %340, %341 : vector<8x8xf32>
    %343 = arith.addf %335, %342 : vector<8x8xf32>
    %344 = vector.extract_strided_slice %251 {offsets = [40, 0], sizes = [8, 1], strides = [1, 1]} : vector<64x2xf32> to vector<8x1xf32>
    %345 = vector.extract_strided_slice %251 {offsets = [40, 1], sizes = [8, 1], strides = [1, 1]} : vector<64x2xf32> to vector<8x1xf32>
    %c5_i32_58 = arith.constant 5 : i32
    %346 = vector.broadcast %c5_i32_58 : i32 to vector<1x8xi32>
    %347 = arith.cmpi eq, %252, %346 : vector<1x8xi32>
    %348 = arith.extui %347 : vector<1x8xi1> to vector<1x8xi32>
    %349 = arith.sitofp %348 : vector<1x8xi32> to vector<1x8xf32>
    %350 = vector.broadcast %344 : vector<8x1xf32> to vector<8x8xf32>
    %351 = vector.broadcast %349 : vector<1x8xf32> to vector<8x8xf32>
    %352 = arith.mulf %350, %351 : vector<8x8xf32>
    %353 = arith.addf %343, %352 : vector<8x8xf32>
    %c2_i32_59 = arith.constant 2 : i32
    %354 = vector.broadcast %c2_i32_59 : i32 to vector<1x8xi32>
    %355 = arith.cmpi eq, %252, %354 : vector<1x8xi32>
    %356 = arith.extui %355 : vector<1x8xi1> to vector<1x8xi32>
    %357 = arith.sitofp %356 : vector<1x8xi32> to vector<1x8xf32>
    %358 = vector.broadcast %345 : vector<8x1xf32> to vector<8x8xf32>
    %359 = vector.broadcast %357 : vector<1x8xf32> to vector<8x8xf32>
    %360 = arith.mulf %358, %359 : vector<8x8xf32>
    %361 = arith.addf %353, %360 : vector<8x8xf32>
    %362 = vector.extract_strided_slice %251 {offsets = [48, 0], sizes = [8, 1], strides = [1, 1]} : vector<64x2xf32> to vector<8x1xf32>
    %363 = vector.extract_strided_slice %251 {offsets = [48, 1], sizes = [8, 1], strides = [1, 1]} : vector<64x2xf32> to vector<8x1xf32>
    %c6_i32_60 = arith.constant 6 : i32
    %364 = vector.broadcast %c6_i32_60 : i32 to vector<1x8xi32>
    %365 = arith.cmpi eq, %252, %364 : vector<1x8xi32>
    %366 = arith.extui %365 : vector<1x8xi1> to vector<1x8xi32>
    %367 = arith.sitofp %366 : vector<1x8xi32> to vector<1x8xf32>
    %368 = vector.broadcast %362 : vector<8x1xf32> to vector<8x8xf32>
    %369 = vector.broadcast %367 : vector<1x8xf32> to vector<8x8xf32>
    %370 = arith.mulf %368, %369 : vector<8x8xf32>
    %371 = arith.addf %361, %370 : vector<8x8xf32>
    %c1_i32_61 = arith.constant 1 : i32
    %372 = vector.broadcast %c1_i32_61 : i32 to vector<1x8xi32>
    %373 = arith.cmpi eq, %252, %372 : vector<1x8xi32>
    %374 = arith.extui %373 : vector<1x8xi1> to vector<1x8xi32>
    %375 = arith.sitofp %374 : vector<1x8xi32> to vector<1x8xf32>
    %376 = vector.broadcast %363 : vector<8x1xf32> to vector<8x8xf32>
    %377 = vector.broadcast %375 : vector<1x8xf32> to vector<8x8xf32>
    %378 = arith.mulf %376, %377 : vector<8x8xf32>
    %379 = arith.addf %371, %378 : vector<8x8xf32>
    %380 = vector.extract_strided_slice %251 {offsets = [56, 0], sizes = [8, 1], strides = [1, 1]} : vector<64x2xf32> to vector<8x1xf32>
    %381 = vector.extract_strided_slice %251 {offsets = [56, 1], sizes = [8, 1], strides = [1, 1]} : vector<64x2xf32> to vector<8x1xf32>
    %c7_i32_62 = arith.constant 7 : i32
    %382 = vector.broadcast %c7_i32_62 : i32 to vector<1x8xi32>
    %383 = arith.cmpi eq, %252, %382 : vector<1x8xi32>
    %384 = arith.extui %383 : vector<1x8xi1> to vector<1x8xi32>
    %385 = arith.sitofp %384 : vector<1x8xi32> to vector<1x8xf32>
    %386 = vector.broadcast %380 : vector<8x1xf32> to vector<8x8xf32>
    %387 = vector.broadcast %385 : vector<1x8xf32> to vector<8x8xf32>
    %388 = arith.mulf %386, %387 : vector<8x8xf32>
    %389 = arith.addf %379, %388 : vector<8x8xf32>
    %c0_i32_63 = arith.constant 0 : i32
    %390 = vector.broadcast %c0_i32_63 : i32 to vector<1x8xi32>
    %391 = arith.cmpi eq, %252, %390 : vector<1x8xi32>
    %392 = arith.extui %391 : vector<1x8xi1> to vector<1x8xi32>
    %393 = arith.sitofp %392 : vector<1x8xi32> to vector<1x8xf32>
    %394 = vector.broadcast %381 : vector<8x1xf32> to vector<8x8xf32>
    %395 = vector.broadcast %393 : vector<1x8xf32> to vector<8x8xf32>
    %396 = arith.mulf %394, %395 : vector<8x8xf32>
    %397 = arith.addf %389, %396 : vector<8x8xf32>
    %c0_64 = arith.constant 0 : index
    %c0_65 = arith.constant 0 : index
    %398 = vector.load %arg8[%c0_64, %c0_65] : memref<1x1xf32, #tpu.memory_space<vmem>>, vector<1x1xf32>
    %399 = vector.broadcast %398 : vector<1x1xf32> to vector<8x8xf32>
    %400 = arith.addf %397, %399 : vector<8x8xf32>
    %c0_66 = arith.constant 0 : index
    %c0_67 = arith.constant 0 : index
    %401 = vector.load %arg2[%c0_66, %c0_67] : memref<1x8xf32, #tpu.memory_space<vmem>>, vector<1x8xf32>
    %402 = vector.broadcast %401 : vector<1x8xf32> to vector<8x8xf32>
    %403 = arith.addf %400, %402 : vector<8x8xf32>
    %cst_68 = arith.constant dense<0xFF800000> : vector<8xf32>
    %404 = vector.multi_reduction <maximumf>, %403, %cst_68 [1] : vector<8x8xf32> to vector<8xf32>
    %405 = vector.shape_cast %404 : vector<8xf32> to vector<8x1xf32>
    %406 = vector.broadcast %405 : vector<8x1xf32> to vector<8x8xf32>
    %407 = arith.subf %403, %406 : vector<8x8xf32>
    %408 = math.exp %407 : vector<8x8xf32>
    %cst_69 = arith.constant dense<0.000000e+00> : vector<8xf32>
    %409 = vector.multi_reduction <add>, %408, %cst_69 [1] : vector<8x8xf32> to vector<8xf32>
    %410 = vector.shape_cast %409 : vector<8xf32> to vector<8x1xf32>
    %411 = tpu.reciprocal %410 {approx = true} : vector<8x1xf32> -> vector<8x1xf32>
    %412 = vector.broadcast %411 : vector<8x1xf32> to vector<8x8xf32>
    %413 = arith.mulf %408, %412 : vector<8x8xf32>
    %cst_70 = arith.constant 0.000000e+00 : f32
    %414 = vector.broadcast %cst_70 : f32 to vector<8x32xf32>
    %cst_71 = arith.constant 0.000000e+00 : f32
    %415 = vector.broadcast %cst_71 : f32 to vector<8x32xf32>
    %416 = vector.extract_strided_slice %413 {offsets = [0, 0], sizes = [8, 1], strides = [1, 1]} : vector<8x8xf32> to vector<8x1xf32>
    %417 = vector.extract_strided_slice %38 {offsets = [0, 0], sizes = [8, 32], strides = [1, 1]} : vector<8x64xf32> to vector<8x32xf32>
    %418 = vector.broadcast %416 : vector<8x1xf32> to vector<8x32xf32>
    %419 = arith.mulf %418, %417 : vector<8x32xf32>
    %420 = arith.addf %414, %419 : vector<8x32xf32>
    %421 = vector.extract_strided_slice %413 {offsets = [0, 7], sizes = [8, 1], strides = [1, 1]} : vector<8x8xf32> to vector<8x1xf32>
    %422 = vector.extract_strided_slice %38 {offsets = [0, 32], sizes = [8, 32], strides = [1, 1]} : vector<8x64xf32> to vector<8x32xf32>
    %423 = vector.broadcast %421 : vector<8x1xf32> to vector<8x32xf32>
    %424 = arith.mulf %423, %422 : vector<8x32xf32>
    %425 = arith.addf %415, %424 : vector<8x32xf32>
    %426 = vector.extract_strided_slice %413 {offsets = [0, 1], sizes = [8, 1], strides = [1, 1]} : vector<8x8xf32> to vector<8x1xf32>
    %427 = vector.extract_strided_slice %68 {offsets = [0, 0], sizes = [8, 32], strides = [1, 1]} : vector<8x64xf32> to vector<8x32xf32>
    %428 = vector.broadcast %426 : vector<8x1xf32> to vector<8x32xf32>
    %429 = arith.mulf %428, %427 : vector<8x32xf32>
    %430 = arith.addf %420, %429 : vector<8x32xf32>
    %431 = vector.extract_strided_slice %413 {offsets = [0, 6], sizes = [8, 1], strides = [1, 1]} : vector<8x8xf32> to vector<8x1xf32>
    %432 = vector.extract_strided_slice %68 {offsets = [0, 32], sizes = [8, 32], strides = [1, 1]} : vector<8x64xf32> to vector<8x32xf32>
    %433 = vector.broadcast %431 : vector<8x1xf32> to vector<8x32xf32>
    %434 = arith.mulf %433, %432 : vector<8x32xf32>
    %435 = arith.addf %425, %434 : vector<8x32xf32>
    %436 = vector.extract_strided_slice %413 {offsets = [0, 2], sizes = [8, 1], strides = [1, 1]} : vector<8x8xf32> to vector<8x1xf32>
    %437 = vector.extract_strided_slice %98 {offsets = [0, 0], sizes = [8, 32], strides = [1, 1]} : vector<8x64xf32> to vector<8x32xf32>
    %438 = vector.broadcast %436 : vector<8x1xf32> to vector<8x32xf32>
    %439 = arith.mulf %438, %437 : vector<8x32xf32>
    %440 = arith.addf %430, %439 : vector<8x32xf32>
    %441 = vector.extract_strided_slice %413 {offsets = [0, 5], sizes = [8, 1], strides = [1, 1]} : vector<8x8xf32> to vector<8x1xf32>
    %442 = vector.extract_strided_slice %98 {offsets = [0, 32], sizes = [8, 32], strides = [1, 1]} : vector<8x64xf32> to vector<8x32xf32>
    %443 = vector.broadcast %441 : vector<8x1xf32> to vector<8x32xf32>
    %444 = arith.mulf %443, %442 : vector<8x32xf32>
    %445 = arith.addf %435, %444 : vector<8x32xf32>
    %446 = vector.extract_strided_slice %413 {offsets = [0, 3], sizes = [8, 1], strides = [1, 1]} : vector<8x8xf32> to vector<8x1xf32>
    %447 = vector.extract_strided_slice %128 {offsets = [0, 0], sizes = [8, 32], strides = [1, 1]} : vector<8x64xf32> to vector<8x32xf32>
    %448 = vector.broadcast %446 : vector<8x1xf32> to vector<8x32xf32>
    %449 = arith.mulf %448, %447 : vector<8x32xf32>
    %450 = arith.addf %440, %449 : vector<8x32xf32>
    %451 = vector.extract_strided_slice %413 {offsets = [0, 4], sizes = [8, 1], strides = [1, 1]} : vector<8x8xf32> to vector<8x1xf32>
    %452 = vector.extract_strided_slice %128 {offsets = [0, 32], sizes = [8, 32], strides = [1, 1]} : vector<8x64xf32> to vector<8x32xf32>
    %453 = vector.broadcast %451 : vector<8x1xf32> to vector<8x32xf32>
    %454 = arith.mulf %453, %452 : vector<8x32xf32>
    %455 = arith.addf %445, %454 : vector<8x32xf32>
    %456 = vector.extract_strided_slice %413 {offsets = [0, 4], sizes = [8, 1], strides = [1, 1]} : vector<8x8xf32> to vector<8x1xf32>
    %457 = vector.extract_strided_slice %158 {offsets = [0, 0], sizes = [8, 32], strides = [1, 1]} : vector<8x64xf32> to vector<8x32xf32>
    %458 = vector.broadcast %456 : vector<8x1xf32> to vector<8x32xf32>
    %459 = arith.mulf %458, %457 : vector<8x32xf32>
    %460 = arith.addf %450, %459 : vector<8x32xf32>
    %461 = vector.extract_strided_slice %413 {offsets = [0, 3], sizes = [8, 1], strides = [1, 1]} : vector<8x8xf32> to vector<8x1xf32>
    %462 = vector.extract_strided_slice %158 {offsets = [0, 32], sizes = [8, 32], strides = [1, 1]} : vector<8x64xf32> to vector<8x32xf32>
    %463 = vector.broadcast %461 : vector<8x1xf32> to vector<8x32xf32>
    %464 = arith.mulf %463, %462 : vector<8x32xf32>
    %465 = arith.addf %455, %464 : vector<8x32xf32>
    %466 = vector.extract_strided_slice %413 {offsets = [0, 5], sizes = [8, 1], strides = [1, 1]} : vector<8x8xf32> to vector<8x1xf32>
    %467 = vector.extract_strided_slice %188 {offsets = [0, 0], sizes = [8, 32], strides = [1, 1]} : vector<8x64xf32> to vector<8x32xf32>
    %468 = vector.broadcast %466 : vector<8x1xf32> to vector<8x32xf32>
    %469 = arith.mulf %468, %467 : vector<8x32xf32>
    %470 = arith.addf %460, %469 : vector<8x32xf32>
    %471 = vector.extract_strided_slice %413 {offsets = [0, 2], sizes = [8, 1], strides = [1, 1]} : vector<8x8xf32> to vector<8x1xf32>
    %472 = vector.extract_strided_slice %188 {offsets = [0, 32], sizes = [8, 32], strides = [1, 1]} : vector<8x64xf32> to vector<8x32xf32>
    %473 = vector.broadcast %471 : vector<8x1xf32> to vector<8x32xf32>
    %474 = arith.mulf %473, %472 : vector<8x32xf32>
    %475 = arith.addf %465, %474 : vector<8x32xf32>
    %476 = vector.extract_strided_slice %413 {offsets = [0, 6], sizes = [8, 1], strides = [1, 1]} : vector<8x8xf32> to vector<8x1xf32>
    %477 = vector.extract_strided_slice %218 {offsets = [0, 0], sizes = [8, 32], strides = [1, 1]} : vector<8x64xf32> to vector<8x32xf32>
    %478 = vector.broadcast %476 : vector<8x1xf32> to vector<8x32xf32>
    %479 = arith.mulf %478, %477 : vector<8x32xf32>
    %480 = arith.addf %470, %479 : vector<8x32xf32>
    %481 = vector.extract_strided_slice %413 {offsets = [0, 1], sizes = [8, 1], strides = [1, 1]} : vector<8x8xf32> to vector<8x1xf32>
    %482 = vector.extract_strided_slice %218 {offsets = [0, 32], sizes = [8, 32], strides = [1, 1]} : vector<8x64xf32> to vector<8x32xf32>
    %483 = vector.broadcast %481 : vector<8x1xf32> to vector<8x32xf32>
    %484 = arith.mulf %483, %482 : vector<8x32xf32>
    %485 = arith.addf %475, %484 : vector<8x32xf32>
    %486 = vector.extract_strided_slice %413 {offsets = [0, 7], sizes = [8, 1], strides = [1, 1]} : vector<8x8xf32> to vector<8x1xf32>
    %487 = vector.extract_strided_slice %248 {offsets = [0, 0], sizes = [8, 32], strides = [1, 1]} : vector<8x64xf32> to vector<8x32xf32>
    %488 = vector.broadcast %486 : vector<8x1xf32> to vector<8x32xf32>
    %489 = arith.mulf %488, %487 : vector<8x32xf32>
    %490 = arith.addf %480, %489 : vector<8x32xf32>
    %491 = vector.extract_strided_slice %413 {offsets = [0, 0], sizes = [8, 1], strides = [1, 1]} : vector<8x8xf32> to vector<8x1xf32>
    %492 = vector.extract_strided_slice %248 {offsets = [0, 32], sizes = [8, 32], strides = [1, 1]} : vector<8x64xf32> to vector<8x32xf32>
    %493 = vector.broadcast %491 : vector<8x1xf32> to vector<8x32xf32>
    %494 = arith.mulf %493, %492 : vector<8x32xf32>
    %495 = arith.addf %485, %494 : vector<8x32xf32>
    %c0_72 = arith.constant 0 : index
    %c0_73 = arith.constant 0 : index
    %496 = vector.load %arg9[%c0_72, %c0_73] : memref<64x32xf32, #tpu.memory_space<vmem>>, vector<64x32xf32>
    %497 = vector.extract_strided_slice %496 {offsets = [0, 0], sizes = [32, 32], strides = [1, 1]} : vector<64x32xf32> to vector<32x32xf32>
    %cst_74 = arith.constant dense<0.000000e+00> : vector<8x32xf32>
    %498 = tpu.matmul %490, %497, %cst_74 {dimension_numbers = #tpu.dot_dimension_numbers<[1], [0], [0], [1], [0, 0, 1, 1], [], []>} : vector<8x32xf32>, vector<32x32xf32>, vector<8x32xf32> -> vector<8x32xf32>
    %499 = vector.extract_strided_slice %496 {offsets = [32, 0], sizes = [32, 32], strides = [1, 1]} : vector<64x32xf32> to vector<32x32xf32>
    %cst_75 = arith.constant dense<0.000000e+00> : vector<8x32xf32>
    %500 = tpu.matmul %495, %499, %cst_75 {dimension_numbers = #tpu.dot_dimension_numbers<[1], [0], [0], [1], [0, 0, 1, 1], [], []>} : vector<8x32xf32>, vector<32x32xf32>, vector<8x32xf32> -> vector<8x32xf32>
    %501 = arith.addf %498, %500 : vector<8x32xf32>
    %c0_76 = arith.constant 0 : index
    %c0_77 = arith.constant 0 : index
    %502 = vector.load %arg10[%c0_76, %c0_77] : memref<1x32xf32, #tpu.memory_space<vmem>>, vector<1x32xf32>
    %503 = vector.broadcast %502 : vector<1x32xf32> to vector<8x32xf32>
    %504 = arith.addf %501, %503 : vector<8x32xf32>
    %cst_78 = arith.constant 0.000000e+00 : f32
    %505 = vector.broadcast %cst_78 : f32 to vector<8x32xf32>
    %506 = arith.maximumf %504, %505 : vector<8x32xf32>
    %c0_79 = arith.constant 0 : index
    %c0_80 = arith.constant 0 : index
    %507 = vector.load %arg11[%c0_79, %c0_80] : memref<32x5xf32, #tpu.memory_space<vmem>>, vector<32x5xf32>
    %cst_81 = arith.constant dense<0.000000e+00> : vector<8x5xf32>
    %508 = tpu.matmul %506, %507, %cst_81 {dimension_numbers = #tpu.dot_dimension_numbers<[1], [0], [0], [1], [0, 0, 1, 1], [], []>} : vector<8x32xf32>, vector<32x5xf32>, vector<8x5xf32> -> vector<8x5xf32>
    %c0_82 = arith.constant 0 : index
    %c0_83 = arith.constant 0 : index
    %509 = vector.load %arg12[%c0_82, %c0_83] : memref<1x5xf32, #tpu.memory_space<vmem>>, vector<1x5xf32>
    %510 = vector.broadcast %509 : vector<1x5xf32> to vector<8x5xf32>
    %511 = arith.addf %508, %510 : vector<8x5xf32>
    %c0_84 = arith.constant 0 : index
    %c0_85 = arith.constant 0 : index
    %512 = vector.load %arg13[%c0_84, %c0_85] : memref<8x5xf32, #tpu.memory_space<vmem>>, vector<8x5xf32>
    tpu.vector_store %arg13[%c0_84, %c0_85], %511 {strides = array<i32>} : memref<8x5xf32, #tpu.memory_space<vmem>>, vector<8x5xf32>,
    return
  }
}

</mosaic_0001>

<llo_original>
// kernel: attention_bigru_forward.1
$region0: #{attention_bigru_forward.1}
  #allocation0 [shape = 'u32[]', space=smem, size = 0x4, offset = 0x4, fixed_abs, tag = 'smem constant byte address 0x4 - core index']
  #allocation1 [shape = 'u32[144,128]{1,0:T(1,128)}', space=vmem, size = 0x12000, scoped, tag = 'internal scratch']
  #allocation2 [shape = 'f32[1,1]{1,0:T(1,128)S(1)}', space=vmem, size = 0x200, scoped, tag = 'scoped memory for attention_bigru_forward.1']
  %s0 = inlined_call_operand.vmem [shape: f32[64,32], index: 0, kind: input, shape index: {}]
  %s1 = inlined_call_operand.vmem [shape: f32[64,64], index: 1, kind: input, shape index: {}]
  %s2 = inlined_call_operand.vmem [shape: f32[1,8], index: 2, kind: input, shape index: {}]
  %s3 = inlined_call_operand.vmem [shape: f32[32,192], index: 3, kind: input, shape index: {}]
  %s4 = inlined_call_operand.vmem [shape: f32[1,192], index: 4, kind: input, shape index: {}]
  %s5 = inlined_call_operand.vmem [shape: f32[64,192], index: 5, kind: input, shape index: {}]
  %s6 = inlined_call_operand.vmem [shape: f32[1,192], index: 6, kind: input, shape index: {}]
  %s7 = inlined_call_operand.vmem [shape: f32[64,2], index: 7, kind: input, shape index: {}]
  %s8 = inlined_call_operand.<no memory space> [shape: f32[1,1], index: 8, kind: input, shape index: {}]
  %s9 = inlined_call_operand.vmem [shape: f32[64,32], index: 9, kind: input, shape index: {}]
  %s10 = inlined_call_operand.vmem [shape: f32[1,32], index: 10, kind: input, shape index: {}]
  %s11 = inlined_call_operand.vmem [shape: f32[32,5], index: 11, kind: input, shape index: {}]
  %s12 = inlined_call_operand.vmem [shape: f32[1,5], index: 12, kind: input, shape index: {}]
  %s13 = inlined_call_operand.vmem [shape: f32[8,5], index: 13, kind: output, shape index: {}]
  %s14 = sld [smem:[#allocation0]]
  $region62: #{attention_bigru_forward.1} parent=0
    _
  %s16 = ssub.s32 1, %s14
  %s17 = scalar_select 0, %s16, %s14
  %v18 = vstv %s8
  %19 = vst [vmem:[#allocation2] sm:$0x1] %v18
  // Predicated region
  $region2: #{attention_bigru_forward.1} parent=0 // pred_check
    _
  $region3: #{attention_bigru_forward.1} parent=0 // pred_check_branch
    %21 = sbr.rel (0) target = $region5
  $region4: #{attention_bigru_forward.1} parent=0 // pred_region
    _
  $region5: #{attention_bigru_forward.1} parent=0 // pred_fallthru
    _
  // Predicated region
  $region6: #{attention_bigru_forward.1} parent=0 // pred_check
    _
  $region7: #{attention_bigru_forward.1} parent=0 // pred_check_branch
    %23 = sbr.rel (0) target = $region9
  $region8: #{attention_bigru_forward.1} parent=0 // pred_region
    _
  $region9: #{attention_bigru_forward.1} parent=0 // pred_fallthru
    _
  // Predicated region
  $region10: #{attention_bigru_forward.1} parent=0 // pred_check
    _
  $region11: #{attention_bigru_forward.1} parent=0 // pred_check_branch
    %25 = sbr.rel (0) target = $region13
  $region12: #{attention_bigru_forward.1} parent=0 // pred_region
    _
  $region13: #{attention_bigru_forward.1} parent=0 // pred_fallthru
    _
  // Predicated region
  $region14: #{attention_bigru_forward.1} parent=0 // pred_check
    _
  $region15: #{attention_bigru_forward.1} parent=0 // pred_check_branch
    %27 = sbr.rel (0) target = $region17
  $region16: #{attention_bigru_forward.1} parent=0 // pred_region
    _
  $region17: #{attention_bigru_forward.1} parent=0 // pred_fallthru
    _
  // Predicated region
  $region18: #{attention_bigru_forward.1} parent=0 // pred_check
    _
  $region19: #{attention_bigru_forward.1} parent=0 // pred_check_branch
    %29 = sbr.rel (0) target = $region21
  $region20: #{attention_bigru_forward.1} parent=0 // pred_region
    _
  $region21: #{attention_bigru_forward.1} parent=0 // pred_fallthru
    _
  // Predicated region
  $region22: #{attention_bigru_forward.1} parent=0 // pred_check
    _
  $region23: #{attention_bigru_forward.1} parent=0 // pred_check_branch
    %31 = sbr.rel (0) target = $region25
  $region24: #{attention_bigru_forward.1} parent=0 // pred_region
    _
  $region25: #{attention_bigru_forward.1} parent=0 // pred_fallthru
    _
  // Predicated region
  $region26: #{attention_bigru_forward.1} parent=0 // pred_check
    _
  $region27: #{attention_bigru_forward.1} parent=0 // pred_check_branch
    %33 = sbr.rel (0) target = $region29
  $region28: #{attention_bigru_forward.1} parent=0 // pred_region
    _
  $region29: #{attention_bigru_forward.1} parent=0 // pred_fallthru
    _
  // Predicated region
  $region30: #{attention_bigru_forward.1} parent=0 // pred_check
    _
  $region31: #{attention_bigru_forward.1} parent=0 // pred_check_branch
    %35 = sbr.rel (0) target = $region33
  $region32: #{attention_bigru_forward.1} parent=0 // pred_region
    _
  $region33: #{attention_bigru_forward.1} parent=0 // pred_fallthru
    _
  // Predicated region
  $region34: #{attention_bigru_forward.1} parent=0 // pred_check
    _
  $region35: #{attention_bigru_forward.1} parent=0 // pred_check_branch
    %37 = sbr.rel (0) target = $region37
  $region36: #{attention_bigru_forward.1} parent=0 // pred_region
    _
  $region37: #{attention_bigru_forward.1} parent=0 // pred_fallthru
    _
  // Predicated region
  $region38: #{attention_bigru_forward.1} parent=0 // pred_check
    _
  $region39: #{attention_bigru_forward.1} parent=0 // pred_check_branch
    %39 = sbr.rel (0) target = $region41
  $region40: #{attention_bigru_forward.1} parent=0 // pred_region
    _
  $region41: #{attention_bigru_forward.1} parent=0 // pred_fallthru
    _
  // Predicated region
  $region42: #{attention_bigru_forward.1} parent=0 // pred_check
    _
  $region43: #{attention_bigru_forward.1} parent=0 // pred_check_branch
    %41 = sbr.rel (0) target = $region45
  $region44: #{attention_bigru_forward.1} parent=0 // pred_region
    _
  $region45: #{attention_bigru_forward.1} parent=0 // pred_fallthru
    _
  // Predicated region
  $region46: #{attention_bigru_forward.1} parent=0 // pred_check
    _
  $region47: #{attention_bigru_forward.1} parent=0 // pred_check_branch
    %43 = sbr.rel (0) target = $region49
  $region48: #{attention_bigru_forward.1} parent=0 // pred_region
    _
  $region49: #{attention_bigru_forward.1} parent=0 // pred_fallthru
    _
  // Predicated region
  $region50: #{attention_bigru_forward.1} parent=0 // pred_check
    _
  $region51: #{attention_bigru_forward.1} parent=0 // pred_check_branch
    %45 = sbr.rel (0) target = $region53
  $region52: #{attention_bigru_forward.1} parent=0 // pred_region
    _
  $region53: #{attention_bigru_forward.1} parent=0 // pred_fallthru
    _
  %v46 = vld [vmem:[%s0] sm:$0xff]
  %v47 = vld [vmem:[%s0 + $0x8] sm:$0xff]
  %v48 = vld [vmem:[%s0 + $0x10] sm:$0xff]
  %v49 = vld [vmem:[%s0 + $0x18] sm:$0xff]
  %v50 = vld [vmem:[%s0 + $0x20] sm:$0xff]
  %v51 = vld [vmem:[%s0 + $0x28] sm:$0xff]
  %v52 = vld [vmem:[%s0 + $0x30] sm:$0xff]
  %v53 = vld [vmem:[%s0 + $0x38] sm:$0xff]
  %v54 = vld [vmem:[%s1] sm:$0xff]
  %v55 = vld [vmem:[%s1 + $0x8] sm:$0xff]
  %v56 = vld [vmem:[%s1 + $0x10] sm:$0xff]
  %v57 = vld [vmem:[%s1 + $0x18] sm:$0xff]
  %v58 = vld [vmem:[%s1 + $0x20] sm:$0xff]
  %v59 = vld [vmem:[%s1 + $0x28] sm:$0xff]
  %v60 = vld [vmem:[%s1 + $0x30] sm:$0xff]
  %v61 = vld [vmem:[%s1 + $0x38] sm:$0xff]
  %v62 = vld [vmem:[%s3] sm:$0xff]
  %v63 = vld [vmem:[%s3 + $0x8] sm:$0xff]
  %v64 = vld [vmem:[%s3 + $0x10] sm:$0xff]
  %v65 = vld [vmem:[%s3 + $0x18] sm:$0xff]
  %v66 = vld [vmem:[%s3 + $0x20] sm:$0xff]
  %v67 = vld [vmem:[%s3 + $0x28] sm:$0xff]
  %v68 = vld [vmem:[%s3 + $0x30] sm:$0xff]
  %v69 = vld [vmem:[%s3 + $0x38] sm:$0xff]
  %v70 = vld [vmem:[%s4] sm:$0x3]
  %v72 = vlaneseq
  %v73 = vshrl.u32 %v72, 7
  %v74 = vsub.s32 0, %v73
  %v75 = vrot.slane %v70, %v74
  %v76 = vlaneseq
  %v77 = vshrl.u32 %v76, 7
  %v78 = vsub.s32 1, %v77
  %v79 = vrot.slane %v70, %v78
  %vm82 = vcmask 261120
  %v84 = vsel %vm82, %v46, 0
  %v87 = vsel %vm82, %v47, 0
  %v90 = vsel %vm82, %v48, 0
  %v93 = vsel %vm82, %v49, 0
  %v96 = vsel %vm82, %v50, 0
  %v99 = vsel %vm82, %v51, 0
  %v102 = vsel %vm82, %v52, 0
  %v105 = vsel %vm82, %v53, 0
  %107 = vmatprep.subr.mxu0 0.0
  %108 = vmatpush1.msra.mxu0 0.0
  %109 = vmatprep.subr.mxu0 0.0
  %110 = vmatpush1.msra.mxu0 0.0
  %111 = vmatprep.subr.mxu0 0.0
  %112 = vmatpush1.msra.mxu0 0.0
  %113 = vmatprep.subr.mxu0 0.0
  %114 = vmatpush1.msra.mxu0 0.0
  %115 = vmatprep.subr.mxu0 0.0
  %116 = vmatpush1.msra.mxu0 0.0
  %117 = vmatprep.subr.mxu0 0.0
  %118 = vmatpush1.msra.mxu0 0.0
  %119 = vmatprep.subr.mxu0 0.0
  %120 = vmatpush1.msra.mxu0 0.0
  %121 = vmatprep.subr.mxu0 0.0
  %122 = vmatpush1.msra.mxu0 0.0
  %123 = vmatprep.subr.mxu0 0.0
  %124 = vmatpush1.msra.mxu0 0.0
  %125 = vmatprep.subr.mxu0 0.0
  %126 = vmatpush1.msra.mxu0 0.0
  %127 = vmatprep.subr.mxu0 0.0
  %128 = vmatpush1.msra.mxu0 0.0
  %129 = vmatprep.subr.mxu0 0.0
  %130 = vmatpush1.msra.mxu0 0.0
  %131 = vmatprep.subr.mxu0 %v69
  %132 = vmatpush1.msra.mxu0 %v68
  %133 = vmatprep.subr.mxu0 %v67
  %134 = vmatpush1.msra.mxu0 %v66
  %135 = vmatprep.subr.mxu0 %v65
  %136 = vmatpush1.msra.mxu0 %v64
  %137 = vmatprep.subr.mxu0 %v63
  %138 = vmatpush1.msra.mxu0 %v62
  %139 = vmatprep.subr.mxu0 0.0
  %140 = vmatpush2.msra.mxu0 0.0
  %141 = vmatprep.subr.mxu0 0.0
  %142 = vmatpush2.msra.mxu0 0.0
  %143 = vmatprep.subr.mxu0 0.0
  %144 = vmatpush2.msra.mxu0 0.0
  %145 = vmatprep.subr.mxu0 0.0
  %146 = vmatpush2.msra.mxu0 0.0
  %147 = vmatprep.subr.mxu0 0.0
  %148 = vmatpush2.msra.mxu0 0.0
  %149 = vmatprep.subr.mxu0 0.0
  %150 = vmatpush2.msra.mxu0 0.0
  %151 = vmatprep.subr.mxu0 0.0
  %152 = vmatpush2.msra.mxu0 0.0
  %153 = vmatprep.subr.mxu0 0.0
  %154 = vmatpush2.msra.mxu0 0.0
  %155 = vmatprep.subr.mxu0 0.0
  %156 = vmatpush2.msra.mxu0 0.0
  %157 = vmatprep.subr.mxu0 0.0
  %158 = vmatpush2.msra.mxu0 0.0
  %159 = vmatprep.subr.mxu0 0.0
  %160 = vmatpush2.msra.mxu0 0.0
  %161 = vmatprep.subr.mxu0 0.0
  %162 = vmatpush2.msra.mxu0 0.0
  %163 = vmatprep.subr.mxu0 0.0
  %164 = vmatpush2.msra.mxu0 0.0
  %165 = vmatprep.subr.mxu0 0.0
  %166 = vmatpush2.msra.mxu0 0.0
  %167 = vmatprep.subr.mxu0 0.0
  %168 = vmatpush2.msra.mxu0 0.0
  %169 = vmatprep.subr.mxu0 0.0
  %170 = vmatpush2.msra.mxu0 0.0
  %171 = vmatprep.mubr.f32.mxu0 0.0
  %172 = vmatmul.mubr.f32.gmra.mxu0 %v84
  %v173 = vpop.f32.mrf.mxu0
  %v174 = vadd.f32 %v75, %v173
  %v175 = vpop.f32.mrf.mxu0
  %v176 = vadd.f32 %v79, %v175
  %177 = vmatprep.mubr.f32.mxu0 0.0
  %178 = vmatmul.mubr.f32.gmra.mxu0 %v87
  %v179 = vpop.f32.mrf.mxu0
  %v180 = vadd.f32 %v75, %v179
  %v181 = vpop.f32.mrf.mxu0
  %v182 = vadd.f32 %v79, %v181
  %183 = vmatprep.mubr.f32.mxu0 0.0
  %184 = vmatmul.mubr.f32.gmra.mxu0 %v90
  %v185 = vpop.f32.mrf.mxu0
  %v186 = vadd.f32 %v75, %v185
  %v187 = vpop.f32.mrf.mxu0
  %v188 = vadd.f32 %v79, %v187
  %189 = vmatprep.mubr.f32.mxu0 0.0
  %190 = vmatmul.mubr.f32.gmra.mxu0 %v93
  %v191 = vpop.f32.mrf.mxu0
  %v192 = vadd.f32 %v75, %v191
  %v193 = vpop.f32.mrf.mxu0
  %v194 = vadd.f32 %v79, %v193
  %195 = vmatprep.mubr.f32.mxu0 0.0
  %196 = vmatmul.mubr.f32.gmra.mxu0 %v96
  %v197 = vpop.f32.mrf.mxu0
  %v198 = vadd.f32 %v75, %v197
  %v199 = vpop.f32.mrf.mxu0
  %v200 = vadd.f32 %v79, %v199
  %201 = vmatprep.mubr.f32.mxu0 0.0
  %202 = vmatmul.mubr.f32.gmra.mxu0 %v99
  %v203 = vpop.f32.mrf.mxu0
  %v204 = vadd.f32 %v75, %v203
  %v205 = vpop.f32.mrf.mxu0
  %v206 = vadd.f32 %v79, %v205
  %207 = vmatprep.mubr.f32.mxu0 0.0
  %208 = vmatmul.mubr.f32.gmra.mxu0 %v102
  %v209 = vpop.f32.mrf.mxu0
  %v210 = vadd.f32 %v75, %v209
  %v211 = vpop.f32.mrf.mxu0
  %v212 = vadd.f32 %v79, %v211
  %213 = vmatprep.mubr.f32.mxu0 0.0
  %214 = vmatmul.mubr.f32.gmra.mxu0 %v105
  %v215 = vpop.f32.mrf.mxu0
  %v216 = vadd.f32 %v75, %v215
  %v217 = vpop.f32.mrf.mxu0
  %v218 = vadd.f32 %v79, %v217
  %219 = vdwg.mxu0
  %v220 = vld [vmem:[%s5] sm:$0xff]
  %v221 = vld [vmem:[%s5 + $0x8] sm:$0xff]
  %v222 = vld [vmem:[%s5 + $0x10] sm:$0xff]
  %v223 = vld [vmem:[%s5 + $0x18] sm:$0xff]
  %v224 = vld [vmem:[%s5 + $0x20] sm:$0xff]
  %v225 = vld [vmem:[%s5 + $0x28] sm:$0xff]
  %v226 = vld [vmem:[%s5 + $0x30] sm:$0xff]
  %v227 = vld [vmem:[%s5 + $0x38] sm:$0xff]
  %v228 = vld [vmem:[%s5 + $0x40] sm:$0xff]
  %v229 = vld [vmem:[%s5 + $0x48] sm:$0xff]
  %v230 = vld [vmem:[%s5 + $0x50] sm:$0xff]
  %v231 = vld [vmem:[%s5 + $0x58] sm:$0xff]
  %v232 = vld [vmem:[%s5 + $0x60] sm:$0xff]
  %v233 = vld [vmem:[%s5 + $0x68] sm:$0xff]
  %v234 = vld [vmem:[%s5 + $0x70] sm:$0xff]
  %v235 = vld [vmem:[%s5 + $0x78] sm:$0xff]
  %v236 = vld [vmem:[%s6] sm:$0x3]
  %v238 = vlaneseq
  %v239 = vshrl.u32 %v238, 7
  %v240 = vsub.s32 0, %v239
  %v241 = vrot.slane %v236, %v240
  %v242 = vlaneseq
  %v243 = vshrl.u32 %v242, 7
  %v244 = vsub.s32 1, %v243
  %v245 = vrot.slane %v236, %v244
  %vm248 = vcmask 523264
  %v250 = vsel %vm248, 0.0, 0
  %252 = vmatprep.subr.mxu0 0.0
  %253 = vmatpush1.msra.mxu0 0.0
  %254 = vmatprep.subr.mxu0 0.0
  %255 = vmatpush1.msra.mxu0 0.0
  %256 = vmatprep.subr.mxu0 0.0
  %257 = vmatpush1.msra.mxu0 0.0
  %258 = vmatprep.subr.mxu0 0.0
  %259 = vmatpush1.msra.mxu0 0.0
  %260 = vmatprep.subr.mxu0 0.0
  %261 = vmatpush1.msra.mxu0 0.0
  %262 = vmatprep.subr.mxu0 0.0
  %263 = vmatpush1.msra.mxu0 0.0
  %264 = vmatprep.subr.mxu0 0.0
  %265 = vmatpush1.msra.mxu0 0.0
  %266 = vmatprep.subr.mxu0 0.0
  %267 = vmatpush1.msra.mxu0 0.0
  %268 = vmatprep.subr.mxu0 %v235
  %269 = vmatpush1.msra.mxu0 %v234
  %270 = vmatprep.subr.mxu0 %v233
  %271 = vmatpush1.msra.mxu0 %v232
  %272 = vmatprep.subr.mxu0 %v231
  %273 = vmatpush1.msra.mxu0 %v230
  %274 = vmatprep.subr.mxu0 %v229
  %275 = vmatpush1.msra.mxu0 %v228
  %276 = vmatprep.subr.mxu0 %v227
  %277 = vmatpush1.msra.mxu0 %v226
  %278 = vmatprep.subr.mxu0 %v225
  %279 = vmatpush1.msra.mxu0 %v224
  %280 = vmatprep.subr.mxu0 %v223
  %281 = vmatpush1.msra.mxu0 %v222
  %282 = vmatprep.subr.mxu0 %v221
  %283 = vmatpush1.msra.mxu0 %v220
  %284 = vmatprep.subr.mxu0 0.0
  %285 = vmatpush2.msra.mxu0 0.0
  %286 = vmatprep.subr.mxu0 0.0
  %287 = vmatpush2.msra.mxu0 0.0
  %288 = vmatprep.subr.mxu0 0.0
  %289 = vmatpush2.msra.mxu0 0.0
  %290 = vmatprep.subr.mxu0 0.0
  %291 = vmatpush2.msra.mxu0 0.0
  %292 = vmatprep.subr.mxu0 0.0
  %293 = vmatpush2.msra.mxu0 0.0
  %294 = vmatprep.subr.mxu0 0.0
  %295 = vmatpush2.msra.mxu0 0.0
  %296 = vmatprep.subr.mxu0 0.0
  %297 = vmatpush2.msra.mxu0 0.0
  %298 = vmatprep.subr.mxu0 0.0
  %299 = vmatpush2.msra.mxu0 0.0
  %300 = vmatprep.subr.mxu0 0.0
  %301 = vmatpush2.msra.mxu0 0.0
  %302 = vmatprep.subr.mxu0 0.0
  %303 = vmatpush2.msra.mxu0 0.0
  %304 = vmatprep.subr.mxu0 0.0
  %305 = vmatpush2.msra.mxu0 0.0
  %306 = vmatprep.subr.mxu0 0.0
  %307 = vmatpush2.msra.mxu0 0.0
  %308 = vmatprep.subr.mxu0 0.0
  %309 = vmatpush2.msra.mxu0 0.0
  %310 = vmatprep.subr.mxu0 0.0
  %311 = vmatpush2.msra.mxu0 0.0
  %312 = vmatprep.subr.mxu0 0.0
  %313 = vmatpush2.msra.mxu0 0.0
  %314 = vmatprep.subr.mxu0 0.0
  %315 = vmatpush2.msra.mxu0 0.0
  %316 = vmatprep.mubr.f32.mxu0 0.0
  %317 = vmatmul.mubr.f32.gmra.mxu0 %v250
  %v318 = vpop.f32.mrf.mxu0
  %v319 = vadd.f32 %v241, %v318
  %v320 = vpop.f32.mrf.mxu0
  %v321 = vadd.f32 %v245, %v320
  %322 = vdwg.mxu0
  %v323 = vadd.f32 %v174, %v319
  %v324 = vxor.u32 %v323, 2147483648
  %v325 = vmul.f32 %v324, 1.442695
  %v326 = vpow.pop %v325
  %v327 = vadd.f32 %v326, 1.0
  %v328 = vrcp.pop %v327
  %v329 = vmul.f32 1.0, %v328
  %v330 = vmul.f32 %v329, %v321
  %v331 = vadd.f32 %v176, %v330
  %v332 = vtanh.pop %v331
  %v333 = vsub.f32 1.0, %v329
  %335 = vrot.lane.b32.xlu0 %v332, 64
  %v336 = vpop.permute.xlu0 %335
  %v338 = vmul.f32 %v333, %v336
  %v339 = vmul.f32 %v329, 0.0
  %v340 = vadd.f32 %v338, %v339
  %vm341 = vcmp.gt.f32.partialorder %v54, 0.5
  %343 = vrot.lane.b32.xlu0 %v340, 64
  %v344 = vpop.permute.xlu0 %343
  %v346 = vsel %vm341, %v344, 0.0
  %v348 = vsel %vm248, %v346, 0
  %350 = vmatprep.subr.mxu0 0.0
  %351 = vmatpush1.msra.mxu0 0.0
  %352 = vmatprep.subr.mxu0 0.0
  %353 = vmatpush1.msra.mxu0 0.0
  %354 = vmatprep.subr.mxu0 0.0
  %355 = vmatpush1.msra.mxu0 0.0
  %356 = vmatprep.subr.mxu0 0.0
  %357 = vmatpush1.msra.mxu0 0.0
  %358 = vmatprep.subr.mxu0 0.0
  %359 = vmatpush1.msra.mxu0 0.0
  %360 = vmatprep.subr.mxu0 0.0
  %361 = vmatpush1.msra.mxu0 0.0
  %362 = vmatprep.subr.mxu0 0.0
  %363 = vmatpush1.msra.mxu0 0.0
  %364 = vmatprep.subr.mxu0 0.0
  %365 = vmatpush1.msra.mxu0 0.0
  %366 = vmatprep.subr.mxu0 %v235
  %367 = vmatpush1.msra.mxu0 %v234
  %368 = vmatprep.subr.mxu0 %v233
  %369 = vmatpush1.msra.mxu0 %v232
  %370 = vmatprep.subr.mxu0 %v231
  %371 = vmatpush1.msra.mxu0 %v230
  %372 = vmatprep.subr.mxu0 %v229
  %373 = vmatpush1.msra.mxu0 %v228
  %374 = vmatprep.subr.mxu0 %v227
  %375 = vmatpush1.msra.mxu0 %v226
  %376 = vmatprep.subr.mxu0 %v225
  %377 = vmatpush1.msra.mxu0 %v224
  %378 = vmatprep.subr.mxu0 %v223
  %379 = vmatpush1.msra.mxu0 %v222
  %380 = vmatprep.subr.mxu0 %v221
  %381 = vmatpush1.msra.mxu0 %v220
  %382 = vmatprep.subr.mxu0 0.0
  %383 = vmatpush2.msra.mxu0 0.0
  %384 = vmatprep.subr.mxu0 0.0
  %385 = vmatpush2.msra.mxu0 0.0
  %386 = vmatprep.subr.mxu0 0.0
  %387 = vmatpush2.msra.mxu0 0.0
  %388 = vmatprep.subr.mxu0 0.0
  %389 = vmatpush2.msra.mxu0 0.0
  %390 = vmatprep.subr.mxu0 0.0
  %391 = vmatpush2.msra.mxu0 0.0
  %392 = vmatprep.subr.mxu0 0.0
  %393 = vmatpush2.msra.mxu0 0.0
  %394 = vmatprep.subr.mxu0 0.0
  %395 = vmatpush2.msra.mxu0 0.0
  %396 = vmatprep.subr.mxu0 0.0
  %397 = vmatpush2.msra.mxu0 0.0
  %398 = vmatprep.subr.mxu0 0.0
  %399 = vmatpush2.msra.mxu0 0.0
  %400 = vmatprep.subr.mxu0 0.0
  %401 = vmatpush2.msra.mxu0 0.0
  %402 = vmatprep.subr.mxu0 0.0
  %403 = vmatpush2.msra.mxu0 0.0
  %404 = vmatprep.subr.mxu0 0.0
  %405 = vmatpush2.msra.mxu0 0.0
  %406 = vmatprep.subr.mxu0 0.0
  %407 = vmatpush2.msra.mxu0 0.0
  %408 = vmatprep.subr.mxu0 0.0
  %409 = vmatpush2.msra.mxu0 0.0
  %410 = vmatprep.subr.mxu0 0.0
  %411 = vmatpush2.msra.mxu0 0.0
  %412 = vmatprep.subr.mxu0 0.0
  %413 = vmatpush2.msra.mxu0 0.0
  %414 = vmatprep.mubr.f32.mxu0 0.0
  %415 = vmatmul.mubr.f32.gmra.mxu0 %v348
  %v416 = vpop.f32.mrf.mxu0
  %v417 = vadd.f32 %v241, %v416
  %v418 = vpop.f32.mrf.mxu0
  %v419 = vadd.f32 %v245, %v418
  %420 = vdwg.mxu0
  %v421 = vadd.f32 %v180, %v417
  %v422 = vxor.u32 %v421, 2147483648
  %v423 = vmul.f32 %v422, 1.442695
  %v424 = vpow.pop %v423
  %v425 = vadd.f32 %v424, 1.0
  %v426 = vrcp.pop %v425
  %v427 = vmul.f32 1.0, %v426
  %v428 = vmul.f32 %v427, %v419
  %v429 = vadd.f32 %v182, %v428
  %v430 = vtanh.pop %v429
  %v431 = vsub.f32 1.0, %v427
  %433 = vrot.lane.b32.xlu0 %v430, 64
  %v434 = vpop.permute.xlu0 %433
  %v436 = vmul.f32 %v431, %v434
  %437 = vrot.lane.b32.xlu0 %v346, 64
  %v438 = vpop.permute.xlu0 %437
  %v440 = vmul.f32 %v427, %v438
  %v441 = vadd.f32 %v436, %v440
  %vm442 = vcmp.gt.f32.partialorder %v55, 0.5
  %444 = vrot.lane.b32.xlu0 %v441, 64
  %v445 = vpop.permute.xlu0 %444
  %v447 = vsel %vm442, %v445, 0.0
  %v448 = vsel %vm442, %v445, %v346
  %v450 = vsel %vm248, %v448, 0
  %452 = vmatprep.subr.mxu0 0.0
  %453 = vmatpush1.msra.mxu0 0.0
  %454 = vmatprep.subr.mxu0 0.0
  %455 = vmatpush1.msra.mxu0 0.0
  %456 = vmatprep.subr.mxu0 0.0
  %457 = vmatpush1.msra.mxu0 0.0
  %458 = vmatprep.subr.mxu0 0.0
  %459 = vmatpush1.msra.mxu0 0.0
  %460 = vmatprep.subr.mxu0 0.0
  %461 = vmatpush1.msra.mxu0 0.0
  %462 = vmatprep.subr.mxu0 0.0
  %463 = vmatpush1.msra.mxu0 0.0
  %464 = vmatprep.subr.mxu0 0.0
  %465 = vmatpush1.msra.mxu0 0.0
  %466 = vmatprep.subr.mxu0 0.0
  %467 = vmatpush1.msra.mxu0 0.0
  %468 = vmatprep.subr.mxu0 %v235
  %469 = vmatpush1.msra.mxu0 %v234
  %470 = vmatprep.subr.mxu0 %v233
  %471 = vmatpush1.msra.mxu0 %v232
  %472 = vmatprep.subr.mxu0 %v231
  %473 = vmatpush1.msra.mxu0 %v230
  %474 = vmatprep.subr.mxu0 %v229
  %475 = vmatpush1.msra.mxu0 %v228
  %476 = vmatprep.subr.mxu0 %v227
  %477 = vmatpush1.msra.mxu0 %v226
  %478 = vmatprep.subr.mxu0 %v225
  %479 = vmatpush1.msra.mxu0 %v224
  %480 = vmatprep.subr.mxu0 %v223
  %481 = vmatpush1.msra.mxu0 %v222
  %482 = vmatprep.subr.mxu0 %v221
  %483 = vmatpush1.msra.mxu0 %v220
  %484 = vmatprep.subr.mxu0 0.0
  %485 = vmatpush2.msra.mxu0 0.0
  %486 = vmatprep.subr.mxu0 0.0
  %487 = vmatpush2.msra.mxu0 0.0
  %488 = vmatprep.subr.mxu0 0.0
  %489 = vmatpush2.msra.mxu0 0.0
  %490 = vmatprep.subr.mxu0 0.0
  %491 = vmatpush2.msra.mxu0 0.0
  %492 = vmatprep.subr.mxu0 0.0
  %493 = vmatpush2.msra.mxu0 0.0
  %494 = vmatprep.subr.mxu0 0.0
  %495 = vmatpush2.msra.mxu0 0.0
  %496 = vmatprep.subr.mxu0 0.0
  %497 = vmatpush2.msra.mxu0 0.0
  %498 = vmatprep.subr.mxu0 0.0
  %499 = vmatpush2.msra.mxu0 0.0
  %500 = vmatprep.subr.mxu0 0.0
  %501 = vmatpush2.msra.mxu0 0.0
  %502 = vmatprep.subr.mxu0 0.0
  %503 = vmatpush2.msra.mxu0 0.0
  %504 = vmatprep.subr.mxu0 0.0
  %505 = vmatpush2.msra.mxu0 0.0
  %506 = vmatprep.subr.mxu0 0.0
  %507 = vmatpush2.msra.mxu0 0.0
  %508 = vmatprep.subr.mxu0 0.0
  %509 = vmatpush2.msra.mxu0 0.0
  %510 = vmatprep.subr.mxu0 0.0
  %511 = vmatpush2.msra.mxu0 0.0
  %512 = vmatprep.subr.mxu0 0.0
  %513 = vmatpush2.msra.mxu0 0.0
  %514 = vmatprep.subr.mxu0 0.0
  %515 = vmatpush2.msra.mxu0 0.0
  %516 = vmatprep.mubr.f32.mxu0 0.0
  %517 = vmatmul.mubr.f32.gmra.mxu0 %v450
  %v518 = vpop.f32.mrf.mxu0
  %v519 = vadd.f32 %v241, %v518
  %v520 = vpop.f32.mrf.mxu0
  %v521 = vadd.f32 %v245, %v520
  %522 = vdwg.mxu0
  %v523 = vadd.f32 %v186, %v519
  %v524 = vxor.u32 %v523, 2147483648
  %v525 = vmul.f32 %v524, 1.442695
  %v526 = vpow.pop %v525
  %v527 = vadd.f32 %v526, 1.0
  %v528 = vrcp.pop %v527
  %v529 = vmul.f32 1.0, %v528
  %v530 = vmul.f32 %v529, %v521
  %v531 = vadd.f32 %v188, %v530
  %v532 = vtanh.pop %v531
  %v533 = vsub.f32 1.0, %v529
  %535 = vrot.lane.b32.xlu0 %v532, 64
  %v536 = vpop.permute.xlu0 %535
  %v538 = vmul.f32 %v533, %v536
  %539 = vrot.lane.b32.xlu0 %v448, 64
  %v540 = vpop.permute.xlu0 %539
  %v542 = vmul.f32 %v529, %v540
  %v543 = vadd.f32 %v538, %v542
  %vm544 = vcmp.gt.f32.partialorder %v56, 0.5
  %546 = vrot.lane.b32.xlu0 %v543, 64
  %v547 = vpop.permute.xlu0 %546
  %v549 = vsel %vm544, %v547, 0.0
  %v550 = vsel %vm544, %v547, %v448
  %v552 = vsel %vm248, %v550, 0
  %554 = vmatprep.subr.mxu0 0.0
  %555 = vmatpush1.msra.mxu0 0.0
  %556 = vmatprep.subr.mxu0 0.0
  %557 = vmatpush1.msra.mxu0 0.0
  %558 = vmatprep.subr.mxu0 0.0
  %559 = vmatpush1.msra.mxu0 0.0
  %560 = vmatprep.subr.mxu0 0.0
  %561 = vmatpush1.msra.mxu0 0.0
  %562 = vmatprep.subr.mxu0 0.0
  %563 = vmatpush1.msra.mxu0 0.0
  %564 = vmatprep.subr.mxu0 0.0
  %565 = vmatpush1.msra.mxu0 0.0
  %566 = vmatprep.subr.mxu0 0.0
  %567 = vmatpush1.msra.mxu0 0.0
  %568 = vmatprep.subr.mxu0 0.0
  %569 = vmatpush1.msra.mxu0 0.0
  %570 = vmatprep.subr.mxu0 %v235
  %571 = vmatpush1.msra.mxu0 %v234
  %572 = vmatprep.subr.mxu0 %v233
  %573 = vmatpush1.msra.mxu0 %v232
  %574 = vmatprep.subr.mxu0 %v231
  %575 = vmatpush1.msra.mxu0 %v230
  %576 = vmatprep.subr.mxu0 %v229
  %577 = vmatpush1.msra.mxu0 %v228
  %578 = vmatprep.subr.mxu0 %v227
  %579 = vmatpush1.msra.mxu0 %v226
  %580 = vmatprep.subr.mxu0 %v225
  %581 = vmatpush1.msra.mxu0 %v224
  %582 = vmatprep.subr.mxu0 %v223
  %583 = vmatpush1.msra.mxu0 %v222
  %584 = vmatprep.subr.mxu0 %v221
  %585 = vmatpush1.msra.mxu0 %v220
  %586 = vmatprep.subr.mxu0 0.0
  %587 = vmatpush2.msra.mxu0 0.0
  %588 = vmatprep.subr.mxu0 0.0
  %589 = vmatpush2.msra.mxu0 0.0
  %590 = vmatprep.subr.mxu0 0.0
  %591 = vmatpush2.msra.mxu0 0.0
  %592 = vmatprep.subr.mxu0 0.0
  %593 = vmatpush2.msra.mxu0 0.0
  %594 = vmatprep.subr.mxu0 0.0
  %595 = vmatpush2.msra.mxu0 0.0
  %596 = vmatprep.subr.mxu0 0.0
  %597 = vmatpush2.msra.mxu0 0.0
  %598 = vmatprep.subr.mxu0 0.0
  %599 = vmatpush2.msra.mxu0 0.0
  %600 = vmatprep.subr.mxu0 0.0
  %601 = vmatpush2.msra.mxu0 0.0
  %602 = vmatprep.subr.mxu0 0.0
  %603 = vmatpush2.msra.mxu0 0.0
  %604 = vmatprep.subr.mxu0 0.0
  %605 = vmatpush2.msra.mxu0 0.0
  %606 = vmatprep.subr.mxu0 0.0
  %607 = vmatpush2.msra.mxu0 0.0
  %608 = vmatprep.subr.mxu0 0.0
  %609 = vmatpush2.msra.mxu0 0.0
  %610 = vmatprep.subr.mxu0 0.0
  %611 = vmatpush2.msra.mxu0 0.0
  %612 = vmatprep.subr.mxu0 0.0
  %613 = vmatpush2.msra.mxu0 0.0
  %614 = vmatprep.subr.mxu0 0.0
  %615 = vmatpush2.msra.mxu0 0.0
  %616 = vmatprep.subr.mxu0 0.0
  %617 = vmatpush2.msra.mxu0 0.0
  %618 = vmatprep.mubr.f32.mxu0 0.0
  %619 = vmatmul.mubr.f32.gmra.mxu0 %v552
  %v620 = vpop.f32.mrf.mxu0
  %v621 = vadd.f32 %v241, %v620
  %v622 = vpop.f32.mrf.mxu0
  %v623 = vadd.f32 %v245, %v622
  %624 = vdwg.mxu0
  %v625 = vadd.f32 %v192, %v621
  %v626 = vxor.u32 %v625, 2147483648
  %v627 = vmul.f32 %v626, 1.442695
  %v628 = vpow.pop %v627
  %v629 = vadd.f32 %v628, 1.0
  %v630 = vrcp.pop %v629
  %v631 = vmul.f32 1.0, %v630
  %v632 = vmul.f32 %v631, %v623
  %v633 = vadd.f32 %v194, %v632
  %v634 = vtanh.pop %v633
  %v635 = vsub.f32 1.0, %v631
  %637 = vrot.lane.b32.xlu0 %v634, 64
  %v638 = vpop.permute.xlu0 %637
  %v640 = vmul.f32 %v635, %v638
  %641 = vrot.lane.b32.xlu0 %v550, 64
  %v642 = vpop.permute.xlu0 %641
  %v644 = vmul.f32 %v631, %v642
  %v645 = vadd.f32 %v640, %v644
  %vm646 = vcmp.gt.f32.partialorder %v57, 0.5
  %648 = vrot.lane.b32.xlu0 %v645, 64
  %v649 = vpop.permute.xlu0 %648
  %v651 = vsel %vm646, %v649, 0.0
  %v652 = vsel %vm646, %v649, %v550
  %v654 = vsel %vm248, %v652, 0
  %656 = vmatprep.subr.mxu0 0.0
  %657 = vmatpush1.msra.mxu0 0.0
  %658 = vmatprep.subr.mxu0 0.0
  %659 = vmatpush1.msra.mxu0 0.0
  %660 = vmatprep.subr.mxu0 0.0
  %661 = vmatpush1.msra.mxu0 0.0
  %662 = vmatprep.subr.mxu0 0.0
  %663 = vmatpush1.msra.mxu0 0.0
  %664 = vmatprep.subr.mxu0 0.0
  %665 = vmatpush1.msra.mxu0 0.0
  %666 = vmatprep.subr.mxu0 0.0
  %667 = vmatpush1.msra.mxu0 0.0
  %668 = vmatprep.subr.mxu0 0.0
  %669 = vmatpush1.msra.mxu0 0.0
  %670 = vmatprep.subr.mxu0 0.0
  %671 = vmatpush1.msra.mxu0 0.0
  %672 = vmatprep.subr.mxu0 %v235
  %673 = vmatpush1.msra.mxu0 %v234
  %674 = vmatprep.subr.mxu0 %v233
  %675 = vmatpush1.msra.mxu0 %v232
  %676 = vmatprep.subr.mxu0 %v231
  %677 = vmatpush1.msra.mxu0 %v230
  %678 = vmatprep.subr.mxu0 %v229
  %679 = vmatpush1.msra.mxu0 %v228
  %680 = vmatprep.subr.mxu0 %v227
  %681 = vmatpush1.msra.mxu0 %v226
  %682 = vmatprep.subr.mxu0 %v225
  %683 = vmatpush1.msra.mxu0 %v224
  %684 = vmatprep.subr.mxu0 %v223
  %685 = vmatpush1.msra.mxu0 %v222
  %686 = vmatprep.subr.mxu0 %v221
  %687 = vmatpush1.msra.mxu0 %v220
  %688 = vmatprep.subr.mxu0 0.0
  %689 = vmatpush2.msra.mxu0 0.0
  %690 = vmatprep.subr.mxu0 0.0
  %691 = vmatpush2.msra.mxu0 0.0
  %692 = vmatprep.subr.mxu0 0.0
  %693 = vmatpush2.msra.mxu0 0.0
  %694 = vmatprep.subr.mxu0 0.0
  %695 = vmatpush2.msra.mxu0 0.0
  %696 = vmatprep.subr.mxu0 0.0
  %697 = vmatpush2.msra.mxu0 0.0
  %698 = vmatprep.subr.mxu0 0.0
  %699 = vmatpush2.msra.mxu0 0.0
  %700 = vmatprep.subr.mxu0 0.0
  %701 = vmatpush2.msra.mxu0 0.0
  %702 = vmatprep.subr.mxu0 0.0
  %703 = vmatpush2.msra.mxu0 0.0
  %704 = vmatprep.subr.mxu0 0.0
  %705 = vmatpush2.msra.mxu0 0.0
  %706 = vmatprep.subr.mxu0 0.0
  %707 = vmatpush2.msra.mxu0 0.0
  %708 = vmatprep.subr.mxu0 0.0
  %709 = vmatpush2.msra.mxu0 0.0
  %710 = vmatprep.subr.mxu0 0.0
  %711 = vmatpush2.msra.mxu0 0.0
  %712 = vmatprep.subr.mxu0 0.0
  %713 = vmatpush2.msra.mxu0 0.0
  %714 = vmatprep.subr.mxu0 0.0
  %715 = vmatpush2.msra.mxu0 0.0
  %716 = vmatprep.subr.mxu0 0.0
  %717 = vmatpush2.msra.mxu0 0.0
  %718 = vmatprep.subr.mxu0 0.0
  %719 = vmatpush2.msra.mxu0 0.0
  %720 = vmatprep.mubr.f32.mxu0 0.0
  %721 = vmatmul.mubr.f32.gmra.mxu0 %v654
  %v722 = vpop.f32.mrf.mxu0
  %v723 = vadd.f32 %v241, %v722
  %v724 = vpop.f32.mrf.mxu0
  %v725 = vadd.f32 %v245, %v724
  %726 = vdwg.mxu0
  %v727 = vadd.f32 %v198, %v723
  %v728 = vxor.u32 %v727, 2147483648
  %v729 = vmul.f32 %v728, 1.442695
  %v730 = vpow.pop %v729
  %v731 = vadd.f32 %v730, 1.0
  %v732 = vrcp.pop %v731
  %v733 = vmul.f32 1.0, %v732
  %v734 = vmul.f32 %v733, %v725
  %v735 = vadd.f32 %v200, %v734
  %v736 = vtanh.pop %v735
  %v737 = vsub.f32 1.0, %v733
  %739 = vrot.lane.b32.xlu0 %v736, 64
  %v740 = vpop.permute.xlu0 %739
  %v742 = vmul.f32 %v737, %v740
  %743 = vrot.lane.b32.xlu0 %v652, 64
  %v744 = vpop.permute.xlu0 %743
  %v746 = vmul.f32 %v733, %v744
  %v747 = vadd.f32 %v742, %v746
  %vm748 = vcmp.gt.f32.partialorder %v58, 0.5
  %750 = vrot.lane.b32.xlu0 %v747, 64
  %v751 = vpop.permute.xlu0 %750
  %v753 = vsel %vm748, %v751, 0.0
  %v754 = vsel %vm748, %v751, %v652
  %v756 = vsel %vm248, %v754, 0
  %758 = vmatprep.subr.mxu0 0.0
  %759 = vmatpush1.msra.mxu0 0.0
  %760 = vmatprep.subr.mxu0 0.0
  %761 = vmatpush1.msra.mxu0 0.0
  %762 = vmatprep.subr.mxu0 0.0
  %763 = vmatpush1.msra.mxu0 0.0
  %764 = vmatprep.subr.mxu0 0.0
  %765 = vmatpush1.msra.mxu0 0.0
  %766 = vmatprep.subr.mxu0 0.0
  %767 = vmatpush1.msra.mxu0 0.0
  %768 = vmatprep.subr.mxu0 0.0
  %769 = vmatpush1.msra.mxu0 0.0
  %770 = vmatprep.subr.mxu0 0.0
  %771 = vmatpush1.msra.mxu0 0.0
  %772 = vmatprep.subr.mxu0 0.0
  %773 = vmatpush1.msra.mxu0 0.0
  %774 = vmatprep.subr.mxu0 %v235
  %775 = vmatpush1.msra.mxu0 %v234
  %776 = vmatprep.subr.mxu0 %v233
  %777 = vmatpush1.msra.mxu0 %v232
  %778 = vmatprep.subr.mxu0 %v231
  %779 = vmatpush1.msra.mxu0 %v230
  %780 = vmatprep.subr.mxu0 %v229
  %781 = vmatpush1.msra.mxu0 %v228
  %782 = vmatprep.subr.mxu0 %v227
  %783 = vmatpush1.msra.mxu0 %v226
  %784 = vmatprep.subr.mxu0 %v225
  %785 = vmatpush1.msra.mxu0 %v224
  %786 = vmatprep.subr.mxu0 %v223
  %787 = vmatpush1.msra.mxu0 %v222
  %788 = vmatprep.subr.mxu0 %v221
  %789 = vmatpush1.msra.mxu0 %v220
  %790 = vmatprep.subr.mxu0 0.0
  %791 = vmatpush2.msra.mxu0 0.0
  %792 = vmatprep.subr.mxu0 0.0
  %793 = vmatpush2.msra.mxu0 0.0
  %794 = vmatprep.subr.mxu0 0.0
  %795 = vmatpush2.msra.mxu0 0.0
  %796 = vmatprep.subr.mxu0 0.0
  %797 = vmatpush2.msra.mxu0 0.0
  %798 = vmatprep.subr.mxu0 0.0
  %799 = vmatpush2.msra.mxu0 0.0
  %800 = vmatprep.subr.mxu0 0.0
  %801 = vmatpush2.msra.mxu0 0.0
  %802 = vmatprep.subr.mxu0 0.0
  %803 = vmatpush2.msra.mxu0 0.0
  %804 = vmatprep.subr.mxu0 0.0
  %805 = vmatpush2.msra.mxu0 0.0
  %806 = vmatprep.subr.mxu0 0.0
  %807 = vmatpush2.msra.mxu0 0.0
  %808 = vmatprep.subr.mxu0 0.0
  %809 = vmatpush2.msra.mxu0 0.0
  %810 = vmatprep.subr.mxu0 0.0
  %811 = vmatpush2.msra.mxu0 0.0
  %812 = vmatprep.subr.mxu0 0.0
  %813 = vmatpush2.msra.mxu0 0.0
  %814 = vmatprep.subr.mxu0 0.0
  %815 = vmatpush2.msra.mxu0 0.0
  %816 = vmatprep.subr.mxu0 0.0
  %817 = vmatpush2.msra.mxu0 0.0
  %818 = vmatprep.subr.mxu0 0.0
  %819 = vmatpush2.msra.mxu0 0.0
  %820 = vmatprep.subr.mxu0 0.0
  %821 = vmatpush2.msra.mxu0 0.0
  %822 = vmatprep.mubr.f32.mxu0 0.0
  %823 = vmatmul.mubr.f32.gmra.mxu0 %v756
  %v824 = vpop.f32.mrf.mxu0
  %v825 = vadd.f32 %v241, %v824
  %v826 = vpop.f32.mrf.mxu0
  %v827 = vadd.f32 %v245, %v826
  %828 = vdwg.mxu0
  %v829 = vadd.f32 %v204, %v825
  %v830 = vxor.u32 %v829, 2147483648
  %v831 = vmul.f32 %v830, 1.442695
  %v832 = vpow.pop %v831
  %v833 = vadd.f32 %v832, 1.0
  %v834 = vrcp.pop %v833
  %v835 = vmul.f32 1.0, %v834
  %v836 = vmul.f32 %v835, %v827
  %v837 = vadd.f32 %v206, %v836
  %v838 = vtanh.pop %v837
  %v839 = vsub.f32 1.0, %v835
  %841 = vrot.lane.b32.xlu0 %v838, 64
  %v842 = vpop.permute.xlu0 %841
  %v844 = vmul.f32 %v839, %v842
  %845 = vrot.lane.b32.xlu0 %v754, 64
  %v846 = vpop.permute.xlu0 %845
  %v848 = vmul.f32 %v835, %v846
  %v849 = vadd.f32 %v844, %v848
  %vm850 = vcmp.gt.f32.partialorder %v59, 0.5
  %852 = vrot.lane.b32.xlu0 %v849, 64
  %v853 = vpop.permute.xlu0 %852
  %v855 = vsel %vm850, %v853, 0.0
  %v856 = vsel %vm850, %v853, %v754
  %v858 = vsel %vm248, %v856, 0
  %860 = vmatprep.subr.mxu0 0.0
  %861 = vmatpush1.msra.mxu0 0.0
  %862 = vmatprep.subr.mxu0 0.0
  %863 = vmatpush1.msra.mxu0 0.0
  %864 = vmatprep.subr.mxu0 0.0
  %865 = vmatpush1.msra.mxu0 0.0
  %866 = vmatprep.subr.mxu0 0.0
  %867 = vmatpush1.msra.mxu0 0.0
  %868 = vmatprep.subr.mxu0 0.0
  %869 = vmatpush1.msra.mxu0 0.0
  %870 = vmatprep.subr.mxu0 0.0
  %871 = vmatpush1.msra.mxu0 0.0
  %872 = vmatprep.subr.mxu0 0.0
  %873 = vmatpush1.msra.mxu0 0.0
  %874 = vmatprep.subr.mxu0 0.0
  %875 = vmatpush1.msra.mxu0 0.0
  %876 = vmatprep.subr.mxu0 %v235
  %877 = vmatpush1.msra.mxu0 %v234
  %878 = vmatprep.subr.mxu0 %v233
  %879 = vmatpush1.msra.mxu0 %v232
  %880 = vmatprep.subr.mxu0 %v231
  %881 = vmatpush1.msra.mxu0 %v230
  %882 = vmatprep.subr.mxu0 %v229
  %883 = vmatpush1.msra.mxu0 %v228
  %884 = vmatprep.subr.mxu0 %v227
  %885 = vmatpush1.msra.mxu0 %v226
  %886 = vmatprep.subr.mxu0 %v225
  %887 = vmatpush1.msra.mxu0 %v224
  %888 = vmatprep.subr.mxu0 %v223
  %889 = vmatpush1.msra.mxu0 %v222
  %890 = vmatprep.subr.mxu0 %v221
  %891 = vmatpush1.msra.mxu0 %v220
  %892 = vmatprep.subr.mxu0 0.0
  %893 = vmatpush2.msra.mxu0 0.0
  %894 = vmatprep.subr.mxu0 0.0
  %895 = vmatpush2.msra.mxu0 0.0
  %896 = vmatprep.subr.mxu0 0.0
  %897 = vmatpush2.msra.mxu0 0.0
  %898 = vmatprep.subr.mxu0 0.0
  %899 = vmatpush2.msra.mxu0 0.0
  %900 = vmatprep.subr.mxu0 0.0
  %901 = vmatpush2.msra.mxu0 0.0
  %902 = vmatprep.subr.mxu0 0.0
  %903 = vmatpush2.msra.mxu0 0.0
  %904 = vmatprep.subr.mxu0 0.0
  %905 = vmatpush2.msra.mxu0 0.0
  %906 = vmatprep.subr.mxu0 0.0
  %907 = vmatpush2.msra.mxu0 0.0
  %908 = vmatprep.subr.mxu0 0.0
  %909 = vmatpush2.msra.mxu0 0.0
  %910 = vmatprep.subr.mxu0 0.0
  %911 = vmatpush2.msra.mxu0 0.0
  %912 = vmatprep.subr.mxu0 0.0
  %913 = vmatpush2.msra.mxu0 0.0
  %914 = vmatprep.subr.mxu0 0.0
  %915 = vmatpush2.msra.mxu0 0.0
  %916 = vmatprep.subr.mxu0 0.0
  %917 = vmatpush2.msra.mxu0 0.0
  %918 = vmatprep.subr.mxu0 0.0
  %919 = vmatpush2.msra.mxu0 0.0
  %920 = vmatprep.subr.mxu0 0.0
  %921 = vmatpush2.msra.mxu0 0.0
  %922 = vmatprep.subr.mxu0 0.0
  %923 = vmatpush2.msra.mxu0 0.0
  %924 = vmatprep.mubr.f32.mxu0 0.0
  %925 = vmatmul.mubr.f32.gmra.mxu0 %v858
  %v926 = vpop.f32.mrf.mxu0
  %v927 = vadd.f32 %v241, %v926
  %v928 = vpop.f32.mrf.mxu0
  %v929 = vadd.f32 %v245, %v928
  %930 = vdwg.mxu0
  %v931 = vadd.f32 %v210, %v927
  %v932 = vxor.u32 %v931, 2147483648
  %v933 = vmul.f32 %v932, 1.442695
  %v934 = vpow.pop %v933
  %v935 = vadd.f32 %v934, 1.0
  %v936 = vrcp.pop %v935
  %v937 = vmul.f32 1.0, %v936
  %v938 = vmul.f32 %v937, %v929
  %v939 = vadd.f32 %v212, %v938
  %v940 = vtanh.pop %v939
  %v941 = vsub.f32 1.0, %v937
  %943 = vrot.lane.b32.xlu0 %v940, 64
  %v944 = vpop.permute.xlu0 %943
  %v946 = vmul.f32 %v941, %v944
  %947 = vrot.lane.b32.xlu0 %v856, 64
  %v948 = vpop.permute.xlu0 %947
  %v950 = vmul.f32 %v937, %v948
  %v951 = vadd.f32 %v946, %v950
  %vm952 = vcmp.gt.f32.partialorder %v60, 0.5
  %954 = vrot.lane.b32.xlu0 %v951, 64
  %v955 = vpop.permute.xlu0 %954
  %v957 = vsel %vm952, %v955, 0.0
  %v958 = vsel %vm952, %v955, %v856
  %v960 = vsel %vm248, %v958, 0
  %962 = vmatprep.subr.mxu0 0.0
  %963 = vmatpush1.msra.mxu0 0.0
  %964 = vmatprep.subr.mxu0 0.0
  %965 = vmatpush1.msra.mxu0 0.0
  %966 = vmatprep.subr.mxu0 0.0
  %967 = vmatpush1.msra.mxu0 0.0
  %968 = vmatprep.subr.mxu0 0.0
  %969 = vmatpush1.msra.mxu0 0.0
  %970 = vmatprep.subr.mxu0 0.0
  %971 = vmatpush1.msra.mxu0 0.0
  %972 = vmatprep.subr.mxu0 0.0
  %973 = vmatpush1.msra.mxu0 0.0
  %974 = vmatprep.subr.mxu0 0.0
  %975 = vmatpush1.msra.mxu0 0.0
  %976 = vmatprep.subr.mxu0 0.0
  %977 = vmatpush1.msra.mxu0 0.0
  %978 = vmatprep.subr.mxu0 %v235
  %979 = vmatpush1.msra.mxu0 %v234
  %980 = vmatprep.subr.mxu0 %v233
  %981 = vmatpush1.msra.mxu0 %v232
  %982 = vmatprep.subr.mxu0 %v231
  %983 = vmatpush1.msra.mxu0 %v230
  %984 = vmatprep.subr.mxu0 %v229
  %985 = vmatpush1.msra.mxu0 %v228
  %986 = vmatprep.subr.mxu0 %v227
  %987 = vmatpush1.msra.mxu0 %v226
  %988 = vmatprep.subr.mxu0 %v225
  %989 = vmatpush1.msra.mxu0 %v224
  %990 = vmatprep.subr.mxu0 %v223
  %991 = vmatpush1.msra.mxu0 %v222
  %992 = vmatprep.subr.mxu0 %v221
  %993 = vmatpush1.msra.mxu0 %v220
  %994 = vmatprep.subr.mxu0 0.0
  %995 = vmatpush2.msra.mxu0 0.0
  %996 = vmatprep.subr.mxu0 0.0
  %997 = vmatpush2.msra.mxu0 0.0
  %998 = vmatprep.subr.mxu0 0.0
  %999 = vmatpush2.msra.mxu0 0.0
  %1000 = vmatprep.subr.mxu0 0.0
  %1001 = vmatpush2.msra.mxu0 0.0
  %1002 = vmatprep.subr.mxu0 0.0
  %1003 = vmatpush2.msra.mxu0 0.0
  %1004 = vmatprep.subr.mxu0 0.0
  %1005 = vmatpush2.msra.mxu0 0.0
  %1006 = vmatprep.subr.mxu0 0.0
  %1007 = vmatpush2.msra.mxu0 0.0
  %1008 = vmatprep.subr.mxu0 0.0
  %1009 = vmatpush2.msra.mxu0 0.0
  %1010 = vmatprep.subr.mxu0 0.0
  %1011 = vmatpush2.msra.mxu0 0.0
  %1012 = vmatprep.subr.mxu0 0.0
  %1013 = vmatpush2.msra.mxu0 0.0
  %1014 = vmatprep.subr.mxu0 0.0
  %1015 = vmatpush2.msra.mxu0 0.0
  %1016 = vmatprep.subr.mxu0 0.0
  %1017 = vmatpush2.msra.mxu0 0.0
  %1018 = vmatprep.subr.mxu0 0.0
  %1019 = vmatpush2.msra.mxu0 0.0
  %1020 = vmatprep.subr.mxu0 0.0
  %1021 = vmatpush2.msra.mxu0 0.0
  %1022 = vmatprep.subr.mxu0 0.0
  %1023 = vmatpush2.msra.mxu0 0.0
  %1024 = vmatprep.subr.mxu0 0.0
  %1025 = vmatpush2.msra.mxu0 0.0
  %1026 = vmatprep.mubr.f32.mxu0 0.0
  %1027 = vmatmul.mubr.f32.gmra.mxu0 %v960
  %v1028 = vpop.f32.mrf.mxu0
  %v1029 = vadd.f32 %v241, %v1028
  %v1030 = vpop.f32.mrf.mxu0
  %v1031 = vadd.f32 %v245, %v1030
  %1032 = vdwg.mxu0
  %v1033 = vadd.f32 %v216, %v1029
  %v1034 = vxor.u32 %v1033, 2147483648
  %v1035 = vmul.f32 %v1034, 1.442695
  %v1036 = vpow.pop %v1035
  %v1037 = vadd.f32 %v1036, 1.0
  %v1038 = vrcp.pop %v1037
  %v1039 = vmul.f32 1.0, %v1038
  %v1040 = vmul.f32 %v1039, %v1031
  %v1041 = vadd.f32 %v218, %v1040
  %v1042 = vtanh.pop %v1041
  %v1043 = vsub.f32 1.0, %v1039
  %1045 = vrot.lane.b32.xlu0 %v1042, 64
  %v1046 = vpop.permute.xlu0 %1045
  %v1048 = vmul.f32 %v1043, %v1046
  %1049 = vrot.lane.b32.xlu0 %v958, 64
  %v1050 = vpop.permute.xlu0 %1049
  %v1052 = vmul.f32 %v1039, %v1050
  %v1053 = vadd.f32 %v1048, %v1052
  %vm1054 = vcmp.gt.f32.partialorder %v61, 0.5
  %1056 = vrot.lane.b32.xlu0 %v1053, 64
  %v1057 = vpop.permute.xlu0 %1056
  %v1059 = vsel %vm1054, %v1057, 0.0
  %v1060 = vld [vmem:[%s7] sm:$0xff]
  %v1061 = vld [vmem:[%s7 + $0x8] sm:$0xff]
  %v1062 = vld [vmem:[%s7 + $0x10] sm:$0xff]
  %v1063 = vld [vmem:[%s7 + $0x18] sm:$0xff]
  %v1064 = vld [vmem:[%s7 + $0x20] sm:$0xff]
  %v1065 = vld [vmem:[%s7 + $0x28] sm:$0xff]
  %v1066 = vld [vmem:[%s7 + $0x30] sm:$0xff]
  %v1067 = vld [vmem:[%s7 + $0x38] sm:$0xff]
  %v1069 = vsel %vm248, %v447, 0
  %v1072 = vsel %vm248, %v549, 0
  %v1075 = vsel %vm248, %v651, 0
  %v1078 = vsel %vm248, %v753, 0
  %v1081 = vsel %vm248, %v855, 0
  %v1084 = vsel %vm248, %v957, 0
  %v1087 = vsel %vm248, %v1059, 0
  %1089 = vmatprep.subr.mxu0 0.0
  %1090 = vmatpush1.msra.mxu0 0.0
  %1091 = vmatprep.subr.mxu0 0.0
  %1092 = vmatpush1.msra.mxu0 0.0
  %1093 = vmatprep.subr.mxu0 0.0
  %1094 = vmatpush1.msra.mxu0 0.0
  %1095 = vmatprep.subr.mxu0 0.0
  %1096 = vmatpush1.msra.mxu0 0.0
  %1097 = vmatprep.subr.mxu0 0.0
  %1098 = vmatpush1.msra.mxu0 0.0
  %1099 = vmatprep.subr.mxu0 0.0
  %1100 = vmatpush1.msra.mxu0 0.0
  %1101 = vmatprep.subr.mxu0 0.0
  %1102 = vmatpush1.msra.mxu0 0.0
  %1103 = vmatprep.subr.mxu0 0.0
  %1104 = vmatpush1.msra.mxu0 0.0
  %1105 = vmatprep.subr.mxu0 0.0
  %1106 = vmatpush1.msra.mxu0 %v1067
  %1107 = vmatprep.subr.mxu0 0.0
  %1108 = vmatpush1.msra.mxu0 %v1066
  %1109 = vmatprep.subr.mxu0 0.0
  %1110 = vmatpush1.msra.mxu0 %v1065
  %1111 = vmatprep.subr.mxu0 0.0
  %1112 = vmatpush1.msra.mxu0 %v1064
  %1113 = vmatprep.subr.mxu0 0.0
  %1114 = vmatpush1.msra.mxu0 %v1063
  %1115 = vmatprep.subr.mxu0 0.0
  %1116 = vmatpush1.msra.mxu0 %v1062
  %1117 = vmatprep.subr.mxu0 0.0
  %1118 = vmatpush1.msra.mxu0 %v1061
  %1119 = vmatprep.subr.mxu0 0.0
  %1120 = vmatpush1.msra.mxu0 %v1060
  %1121 = vmatprep.subr.mxu0 0.0
  %1122 = vmatpush2.msra.mxu0 0.0
  %1123 = vmatprep.subr.mxu0 0.0
  %1124 = vmatpush2.msra.mxu0 0.0
  %1125 = vmatprep.subr.mxu0 0.0
  %1126 = vmatpush2.msra.mxu0 0.0
  %1127 = vmatprep.subr.mxu0 0.0
  %1128 = vmatpush2.msra.mxu0 0.0
  %1129 = vmatprep.subr.mxu0 0.0
  %1130 = vmatpush2.msra.mxu0 0.0
  %1131 = vmatprep.subr.mxu0 0.0
  %1132 = vmatpush2.msra.mxu0 0.0
  %1133 = vmatprep.subr.mxu0 0.0
  %1134 = vmatpush2.msra.mxu0 0.0
  %1135 = vmatprep.subr.mxu0 0.0
  %1136 = vmatpush2.msra.mxu0 0.0
  %1137 = vmatprep.subr.mxu0 0.0
  %1138 = vmatpush2.msra.mxu0 0.0
  %1139 = vmatprep.subr.mxu0 0.0
  %1140 = vmatpush2.msra.mxu0 0.0
  %1141 = vmatprep.subr.mxu0 0.0
  %1142 = vmatpush2.msra.mxu0 0.0
  %1143 = vmatprep.subr.mxu0 0.0
  %1144 = vmatpush2.msra.mxu0 0.0
  %1145 = vmatprep.subr.mxu0 0.0
  %1146 = vmatpush2.msra.mxu0 0.0
  %1147 = vmatprep.subr.mxu0 0.0
  %1148 = vmatpush2.msra.mxu0 0.0
  %1149 = vmatprep.subr.mxu0 0.0
  %1150 = vmatpush2.msra.mxu0 0.0
  %1151 = vmatprep.subr.mxu0 0.0
  %1152 = vmatpush2.msra.mxu0 0.0
  %1153 = vmatprep.mubr.f32.mxu0 0.0
  %1154 = vmatmul.mubr.f32.gmra.mxu0 %v348
  %v1155 = vpop.f32.mrf.mxu0
  %v1156 = vadd.f32 0.0, %v1155
  %v1157 = vpop.f32.mrf.mxu0
  %1158 = vmatprep.mubr.f32.mxu0 0.0
  %1159 = vmatmul.mubr.f32.gmra.mxu0 %v1069
  %v1160 = vpop.f32.mrf.mxu0
  %v1161 = vadd.f32 0.0, %v1160
  %v1162 = vpop.f32.mrf.mxu0
  %1163 = vmatprep.mubr.f32.mxu0 0.0
  %1164 = vmatmul.mubr.f32.gmra.mxu0 %v1072
  %v1165 = vpop.f32.mrf.mxu0
  %v1166 = vadd.f32 0.0, %v1165
  %v1167 = vpop.f32.mrf.mxu0
  %1168 = vmatprep.mubr.f32.mxu0 0.0
  %1169 = vmatmul.mubr.f32.gmra.mxu0 %v1075
  %v1170 = vpop.f32.mrf.mxu0
  %v1171 = vadd.f32 0.0, %v1170
  %v1172 = vpop.f32.mrf.mxu0
  %1173 = vmatprep.mubr.f32.mxu0 0.0
  %1174 = vmatmul.mubr.f32.gmra.mxu0 %v1078
  %v1175 = vpop.f32.mrf.mxu0
  %v1176 = vadd.f32 0.0, %v1175
  %v1177 = vpop.f32.mrf.mxu0
  %1178 = vmatprep.mubr.f32.mxu0 0.0
  %1179 = vmatmul.mubr.f32.gmra.mxu0 %v1081
  %v1180 = vpop.f32.mrf.mxu0
  %v1181 = vadd.f32 0.0, %v1180
  %v1182 = vpop.f32.mrf.mxu0
  %1183 = vmatprep.mubr.f32.mxu0 0.0
  %1184 = vmatmul.mubr.f32.gmra.mxu0 %v1084
  %v1185 = vpop.f32.mrf.mxu0
  %v1186 = vadd.f32 0.0, %v1185
  %v1187 = vpop.f32.mrf.mxu0
  %1188 = vmatprep.mubr.f32.mxu0 0.0
  %1189 = vmatmul.mubr.f32.gmra.mxu0 %v1087
  %v1190 = vpop.f32.mrf.mxu0
  %v1191 = vadd.f32 0.0, %v1190
  %v1192 = vpop.f32.mrf.mxu0
  %1193 = vdwg.mxu0
  %v1194 = vlaneseq
  %v1195 = vand.u32 %v1194, 127
  %vm1196 = vcmp.eq.s32.totalorder %v1195, 0
  %v1197 = vsel %vm1196, 1, 0
  %v1198 = vcvt.s32.f32 %v1197
  %1200 = vset.pattern.permute.xlu0 0
  %1201 = vperm.xlu0 %1200, %v1156
  %v1202 = vpop.permute.xlu0 %1201
  %v1204 = vmul.f32 %v1202, %v1198
  %v1205 = vadd.f32 %v1204, 0.0
  %vm1206 = vcmp.eq.s32.totalorder %v1195, 7
  %v1207 = vsel %vm1206, 1, 0
  %v1208 = vcvt.s32.f32 %v1207
  %1209 = vset.pattern.permute.xlu0 1
  %1210 = vperm.xlu0 %1209, %v1156
  %v1211 = vpop.permute.xlu0 %1210
  %v1213 = vmul.f32 %v1211, %v1208
  %v1214 = vadd.f32 %v1205, %v1213
  %vm1215 = vcmp.eq.s32.totalorder %v1195, 1
  %v1216 = vsel %vm1215, 1, 0
  %v1217 = vcvt.s32.f32 %v1216
  %1219 = vset.pattern.permute.xlu0 0
  %1220 = vperm.xlu0 %1219, %v1161
  %v1221 = vpop.permute.xlu0 %1220
  %v1223 = vmul.f32 %v1221, %v1217
  %v1224 = vadd.f32 %v1214, %v1223
  %vm1225 = vcmp.eq.s32.totalorder %v1195, 6
  %v1226 = vsel %vm1225, 1, 0
  %v1227 = vcvt.s32.f32 %v1226
  %1228 = vset.pattern.permute.xlu0 1
  %1229 = vperm.xlu0 %1228, %v1161
  %v1230 = vpop.permute.xlu0 %1229
  %v1232 = vmul.f32 %v1230, %v1227
  %v1233 = vadd.f32 %v1224, %v1232
  %vm1234 = vcmp.eq.s32.totalorder %v1195, 2
  %v1235 = vsel %vm1234, 1, 0
  %v1236 = vcvt.s32.f32 %v1235
  %1238 = vset.pattern.permute.xlu0 0
  %1239 = vperm.xlu0 %1238, %v1166
  %v1240 = vpop.permute.xlu0 %1239
  %v1242 = vmul.f32 %v1240, %v1236
  %v1243 = vadd.f32 %v1233, %v1242
  %vm1244 = vcmp.eq.s32.totalorder %v1195, 5
  %v1245 = vsel %vm1244, 1, 0
  %v1246 = vcvt.s32.f32 %v1245
  %1247 = vset.pattern.permute.xlu0 1
  %1248 = vperm.xlu0 %1247, %v1166
  %v1249 = vpop.permute.xlu0 %1248
  %v1251 = vmul.f32 %v1249, %v1246
  %v1252 = vadd.f32 %v1243, %v1251
  %vm1253 = vcmp.eq.s32.totalorder %v1195, 3
  %v1254 = vsel %vm1253, 1, 0
  %v1255 = vcvt.s32.f32 %v1254
  %1257 = vset.pattern.permute.xlu0 0
  %1258 = vperm.xlu0 %1257, %v1171
  %v1259 = vpop.permute.xlu0 %1258
  %v1261 = vmul.f32 %v1259, %v1255
  %v1262 = vadd.f32 %v1252, %v1261
  %vm1263 = vcmp.eq.s32.totalorder %v1195, 4
  %v1264 = vsel %vm1263, 1, 0
  %v1265 = vcvt.s32.f32 %v1264
  %1266 = vset.pattern.permute.xlu0 1
  %1267 = vperm.xlu0 %1266, %v1171
  %v1268 = vpop.permute.xlu0 %1267
  %v1270 = vmul.f32 %v1268, %v1265
  %v1271 = vadd.f32 %v1262, %v1270
  %1273 = vset.pattern.permute.xlu0 0
  %1274 = vperm.xlu0 %1273, %v1176
  %v1275 = vpop.permute.xlu0 %1274
  %v1277 = vmul.f32 %v1275, %v1265
  %v1278 = vadd.f32 %v1271, %v1277
  %1279 = vset.pattern.permute.xlu0 1
  %1280 = vperm.xlu0 %1279, %v1176
  %v1281 = vpop.permute.xlu0 %1280
  %v1283 = vmul.f32 %v1281, %v1255
  %v1284 = vadd.f32 %v1278, %v1283
  %1286 = vset.pattern.permute.xlu0 0
  %1287 = vperm.xlu0 %1286, %v1181
  %v1288 = vpop.permute.xlu0 %1287
  %v1290 = vmul.f32 %v1288, %v1246
  %v1291 = vadd.f32 %v1284, %v1290
  %1292 = vset.pattern.permute.xlu0 1
  %1293 = vperm.xlu0 %1292, %v1181
  %v1294 = vpop.permute.xlu0 %1293
  %v1296 = vmul.f32 %v1294, %v1236
  %v1297 = vadd.f32 %v1291, %v1296
  %1299 = vset.pattern.permute.xlu0 0
  %1300 = vperm.xlu0 %1299, %v1186
  %v1301 = vpop.permute.xlu0 %1300
  %v1303 = vmul.f32 %v1301, %v1227
  %v1304 = vadd.f32 %v1297, %v1303
  %1305 = vset.pattern.permute.xlu0 1
  %1306 = vperm.xlu0 %1305, %v1186
  %v1307 = vpop.permute.xlu0 %1306
  %v1309 = vmul.f32 %v1307, %v1217
  %v1310 = vadd.f32 %v1304, %v1309
  %1312 = vset.pattern.permute.xlu0 0
  %1313 = vperm.xlu0 %1312, %v1191
  %v1314 = vpop.permute.xlu0 %1313
  %v1316 = vmul.f32 %v1314, %v1208
  %v1317 = vadd.f32 %v1310, %v1316
  %1318 = vset.pattern.permute.xlu0 1
  %1319 = vperm.xlu0 %1318, %v1191
  %v1320 = vpop.permute.xlu0 %1319
  %v1322 = vmul.f32 %v1320, %v1198
  %v1323 = vadd.f32 %v1317, %v1322
  %v1324 = vld [vmem:[#allocation2] sm:$0x1]
  %v1326 = vlaneseq
  %v1327 = vshrl.u32 %v1326, 7
  %v1328 = vsub.s32 0, %v1327
  %v1329 = vrot.slane %v1324, %v1328
  %1330 = vset.pattern.permute.xlu0 0
  %1331 = vperm.xlu0 %1330, %v1329
  %v1332 = vpop.permute.xlu0 %1331
  %v1334 = vadd.f32 %v1323, %v1332
  %v1335 = vld [vmem:[%s2] sm:$0x1]
  %v1337 = vlaneseq
  %v1338 = vshrl.u32 %v1337, 7
  %v1339 = vsub.s32 0, %v1338
  %v1340 = vrot.slane %v1335, %v1339
  %v1342 = vadd.f32 %v1334, %v1340
  %vm1343 = vcmask 64512
  %v1344 = vsel %vm1343, %v1342, -inf
  %1345 = vmax.xlane.f32.xlu0 %v1344
  %v1346 = vpop.xlane.xlu0 %1345
  %v1347 = vsub.f32 %v1342, %v1346
  %v1348 = vmul.f32 %v1347, 1.442695
  %v1349 = vpow.pop %v1348
  %v1350 = vsel %vm1343, %v1349, 0.0
  %1351 = vadd.xlane.f32.xlu0 %v1350
  %v1352 = vpop.xlane.xlu0 %1351
  %v1353 = vrcp.pop %v1352
  %v1354 = vmul.f32 %v1349, %v1353
  %1356 = vset.pattern.permute.xlu0 0
  %1357 = vperm.xlu0 %1356, %v1354
  %v1358 = vpop.permute.xlu0 %1357
  %v1360 = vmul.f32 %v1358, %v346
  %v1361 = vadd.f32 %v1360, 0.0
  %1362 = vset.pattern.permute.xlu0 7
  %1363 = vperm.xlu0 %1362, %v1354
  %v1364 = vpop.permute.xlu0 %1363
  %v1366 = vmul.f32 %v1364, %v346
  %v1367 = vadd.f32 %v1366, 0.0
  %1368 = vset.pattern.permute.xlu0 1
  %1369 = vperm.xlu0 %1368, %v1354
  %v1370 = vpop.permute.xlu0 %1369
  %v1372 = vmul.f32 %v1370, %v447
  %v1373 = vadd.f32 %v1361, %v1372
  %1374 = vset.pattern.permute.xlu0 6
  %1375 = vperm.xlu0 %1374, %v1354
  %v1376 = vpop.permute.xlu0 %1375
  %v1378 = vmul.f32 %v1376, %v447
  %v1379 = vadd.f32 %v1367, %v1378
  %1380 = vset.pattern.permute.xlu0 2
  %1381 = vperm.xlu0 %1380, %v1354
  %v1382 = vpop.permute.xlu0 %1381
  %v1384 = vmul.f32 %v1382, %v549
  %v1385 = vadd.f32 %v1373, %v1384
  %1386 = vset.pattern.permute.xlu0 5
  %1387 = vperm.xlu0 %1386, %v1354
  %v1388 = vpop.permute.xlu0 %1387
  %v1390 = vmul.f32 %v1388, %v549
  %v1391 = vadd.f32 %v1379, %v1390
  %1392 = vset.pattern.permute.xlu0 3
  %1393 = vperm.xlu0 %1392, %v1354
  %v1394 = vpop.permute.xlu0 %1393
  %v1396 = vmul.f32 %v1394, %v651
  %v1397 = vadd.f32 %v1385, %v1396
  %1398 = vset.pattern.permute.xlu0 4
  %1399 = vperm.xlu0 %1398, %v1354
  %v1400 = vpop.permute.xlu0 %1399
  %v1402 = vmul.f32 %v1400, %v651
  %v1403 = vadd.f32 %v1391, %v1402
  %v1404 = vmul.f32 %v1400, %v753
  %v1405 = vadd.f32 %v1397, %v1404
  %v1406 = vmul.f32 %v1394, %v753
  %v1407 = vadd.f32 %v1403, %v1406
  %v1408 = vmul.f32 %v1388, %v855
  %v1409 = vadd.f32 %v1405, %v1408
  %v1410 = vmul.f32 %v1382, %v855
  %v1411 = vadd.f32 %v1407, %v1410
  %v1412 = vmul.f32 %v1376, %v957
  %v1413 = vadd.f32 %v1409, %v1412
  %v1414 = vmul.f32 %v1370, %v957
  %v1415 = vadd.f32 %v1411, %v1414
  %v1416 = vmul.f32 %v1364, %v1059
  %v1417 = vadd.f32 %v1413, %v1416
  %v1418 = vmul.f32 %v1358, %v1059
  %v1419 = vadd.f32 %v1415, %v1418
  %v1420 = vld [vmem:[%s9] sm:$0xff]
  %v1421 = vld [vmem:[%s9 + $0x8] sm:$0xff]
  %v1422 = vld [vmem:[%s9 + $0x10] sm:$0xff]
  %v1423 = vld [vmem:[%s9 + $0x18] sm:$0xff]
  %v1424 = vld [vmem:[%s9 + $0x20] sm:$0xff]
  %v1425 = vld [vmem:[%s9 + $0x28] sm:$0xff]
  %v1426 = vld [vmem:[%s9 + $0x30] sm:$0xff]
  %v1427 = vld [vmem:[%s9 + $0x38] sm:$0xff]
  %1429 = vrot.lane.b32.xlu0 %v1419, 96
  %v1430 = vpop.permute.xlu0 %1429
  %v1431 = vsel %vm82, %v1430, 0
  %1433 = vmatprep.subr.mxu0 0.0
  %1434 = vmatpush1.msra.mxu0 0.0
  %1435 = vmatprep.subr.mxu0 0.0
  %1436 = vmatpush1.msra.mxu0 0.0
  %1437 = vmatprep.subr.mxu0 0.0
  %1438 = vmatpush1.msra.mxu0 0.0
  %1439 = vmatprep.subr.mxu0 0.0
  %1440 = vmatpush1.msra.mxu0 0.0
  %1441 = vmatprep.subr.mxu0 0.0
  %1442 = vmatpush1.msra.mxu0 0.0
  %1443 = vmatprep.subr.mxu0 0.0
  %1444 = vmatpush1.msra.mxu0 0.0
  %1445 = vmatprep.subr.mxu0 0.0
  %1446 = vmatpush1.msra.mxu0 0.0
  %1447 = vmatprep.subr.mxu0 0.0
  %1448 = vmatpush1.msra.mxu0 0.0
  %1449 = vmatprep.subr.mxu0 0.0
  %1450 = vmatpush1.msra.mxu0 0.0
  %1451 = vmatprep.subr.mxu0 0.0
  %1452 = vmatpush1.msra.mxu0 0.0
  %1453 = vmatprep.subr.mxu0 0.0
  %1454 = vmatpush1.msra.mxu0 0.0
  %1455 = vmatprep.subr.mxu0 0.0
  %1456 = vmatpush1.msra.mxu0 0.0
  %1457 = vmatprep.subr.mxu0 0.0
  %1458 = vmatpush1.msra.mxu0 %v1427
  %1459 = vmatprep.subr.mxu0 0.0
  %1460 = vmatpush1.msra.mxu0 %v1426
  %1461 = vmatprep.subr.mxu0 0.0
  %1462 = vmatpush1.msra.mxu0 %v1425
  %1463 = vmatprep.subr.mxu0 0.0
  %1464 = vmatpush1.msra.mxu0 %v1424
  %1465 = vmatprep.subr.mxu0 0.0
  %1466 = vmatpush2.msra.mxu0 0.0
  %1467 = vmatprep.subr.mxu0 0.0
  %1468 = vmatpush2.msra.mxu0 0.0
  %1469 = vmatprep.subr.mxu0 0.0
  %1470 = vmatpush2.msra.mxu0 0.0
  %1471 = vmatprep.subr.mxu0 0.0
  %1472 = vmatpush2.msra.mxu0 0.0
  %1473 = vmatprep.subr.mxu0 0.0
  %1474 = vmatpush2.msra.mxu0 0.0
  %1475 = vmatprep.subr.mxu0 0.0
  %1476 = vmatpush2.msra.mxu0 0.0
  %1477 = vmatprep.subr.mxu0 0.0
  %1478 = vmatpush2.msra.mxu0 0.0
  %1479 = vmatprep.subr.mxu0 0.0
  %1480 = vmatpush2.msra.mxu0 0.0
  %1481 = vmatprep.subr.mxu0 0.0
  %1482 = vmatpush2.msra.mxu0 0.0
  %1483 = vmatprep.subr.mxu0 0.0
  %1484 = vmatpush2.msra.mxu0 0.0
  %1485 = vmatprep.subr.mxu0 0.0
  %1486 = vmatpush2.msra.mxu0 0.0
  %1487 = vmatprep.subr.mxu0 0.0
  %1488 = vmatpush2.msra.mxu0 0.0
  %1489 = vmatprep.subr.mxu0 0.0
  %1490 = vmatpush2.msra.mxu0 0.0
  %1491 = vmatprep.subr.mxu0 0.0
  %1492 = vmatpush2.msra.mxu0 0.0
  %1493 = vmatprep.subr.mxu0 0.0
  %1494 = vmatpush2.msra.mxu0 0.0
  %1495 = vmatprep.subr.mxu0 0.0
  %1496 = vmatpush2.msra.mxu0 0.0
  %1497 = vmatprep.mubr.f32.mxu0 0.0
  %1498 = vmatmul.mubr.f32.gmra.mxu0 %v1431
  %v1499 = vpop.f32.mrf.mxu0
  %v1500 = vadd.f32 0.0, %v1499
  %v1501 = vpop.f32.mrf.mxu0
  %1502 = vdwg.mxu0
  %v1504 = vsel %vm82, %v1417, 0
  %1506 = vmatprep.subr.mxu0 0.0
  %1507 = vmatpush1.msra.mxu0 0.0
  %1508 = vmatprep.subr.mxu0 0.0
  %1509 = vmatpush1.msra.mxu0 0.0
  %1510 = vmatprep.subr.mxu0 0.0
  %1511 = vmatpush1.msra.mxu0 0.0
  %1512 = vmatprep.subr.mxu0 0.0
  %1513 = vmatpush1.msra.mxu0 0.0
  %1514 = vmatprep.subr.mxu0 0.0
  %1515 = vmatpush1.msra.mxu0 0.0
  %1516 = vmatprep.subr.mxu0 0.0
  %1517 = vmatpush1.msra.mxu0 0.0
  %1518 = vmatprep.subr.mxu0 0.0
  %1519 = vmatpush1.msra.mxu0 0.0
  %1520 = vmatprep.subr.mxu0 0.0
  %1521 = vmatpush1.msra.mxu0 0.0
  %1522 = vmatprep.subr.mxu0 0.0
  %1523 = vmatpush1.msra.mxu0 0.0
  %1524 = vmatprep.subr.mxu0 0.0
  %1525 = vmatpush1.msra.mxu0 0.0
  %1526 = vmatprep.subr.mxu0 0.0
  %1527 = vmatpush1.msra.mxu0 0.0
  %1528 = vmatprep.subr.mxu0 0.0
  %1529 = vmatpush1.msra.mxu0 0.0
  %1530 = vmatprep.subr.mxu0 0.0
  %1531 = vmatpush1.msra.mxu0 %v1423
  %1532 = vmatprep.subr.mxu0 0.0
  %1533 = vmatpush1.msra.mxu0 %v1422
  %1534 = vmatprep.subr.mxu0 0.0
  %1535 = vmatpush1.msra.mxu0 %v1421
  %1536 = vmatprep.subr.mxu0 0.0
  %1537 = vmatpush1.msra.mxu0 %v1420
  %1538 = vmatprep.subr.mxu0 0.0
  %1539 = vmatpush2.msra.mxu0 0.0
  %1540 = vmatprep.subr.mxu0 0.0
  %1541 = vmatpush2.msra.mxu0 0.0
  %1542 = vmatprep.subr.mxu0 0.0
  %1543 = vmatpush2.msra.mxu0 0.0
  %1544 = vmatprep.subr.mxu0 0.0
  %1545 = vmatpush2.msra.mxu0 0.0
  %1546 = vmatprep.subr.mxu0 0.0
  %1547 = vmatpush2.msra.mxu0 0.0
  %1548 = vmatprep.subr.mxu0 0.0
  %1549 = vmatpush2.msra.mxu0 0.0
  %1550 = vmatprep.subr.mxu0 0.0
  %1551 = vmatpush2.msra.mxu0 0.0
  %1552 = vmatprep.subr.mxu0 0.0
  %1553 = vmatpush2.msra.mxu0 0.0
  %1554 = vmatprep.subr.mxu0 0.0
  %1555 = vmatpush2.msra.mxu0 0.0
  %1556 = vmatprep.subr.mxu0 0.0
  %1557 = vmatpush2.msra.mxu0 0.0
  %1558 = vmatprep.subr.mxu0 0.0
  %1559 = vmatpush2.msra.mxu0 0.0
  %1560 = vmatprep.subr.mxu0 0.0
  %1561 = vmatpush2.msra.mxu0 0.0
  %1562 = vmatprep.subr.mxu0 0.0
  %1563 = vmatpush2.msra.mxu0 0.0
  %1564 = vmatprep.subr.mxu0 0.0
  %1565 = vmatpush2.msra.mxu0 0.0
  %1566 = vmatprep.subr.mxu0 0.0
  %1567 = vmatpush2.msra.mxu0 0.0
  %1568 = vmatprep.subr.mxu0 0.0
  %1569 = vmatpush2.msra.mxu0 0.0
  %1570 = vmatprep.mubr.f32.mxu0 0.0
  %1571 = vmatmul.mubr.f32.gmra.mxu0 %v1504
  %v1572 = vpop.f32.mrf.mxu0
  %v1573 = vadd.f32 %v1500, %v1572
  %v1574 = vpop.f32.mrf.mxu0
  %1575 = vdwg.mxu0
  %v1576 = vld [vmem:[%s10] sm:$0x1]
  %v1578 = vlaneseq
  %v1579 = vshrl.u32 %v1578, 7
  %v1580 = vsub.s32 0, %v1579
  %v1581 = vrot.slane %v1576, %v1580
  %v1583 = vadd.f32 %v1573, %v1581
  %v1584 = vmax.f32 %v1583, 0.0
  %v1585 = vld [vmem:[%s11] sm:$0xff]
  %v1586 = vld [vmem:[%s11 + $0x8] sm:$0xff]
  %v1587 = vld [vmem:[%s11 + $0x10] sm:$0xff]
  %v1588 = vld [vmem:[%s11 + $0x18] sm:$0xff]
  %v1589 = vld [vmem:[%s12] sm:$0x1]
  %v1591 = vlaneseq
  %v1592 = vshrl.u32 %v1591, 7
  %v1593 = vsub.s32 0, %v1592
  %v1594 = vrot.slane %v1589, %v1593
  %v1597 = vsel %vm82, %v1584, 0
  %1599 = vmatprep.subr.mxu0 0.0
  %1600 = vmatpush1.msra.mxu0 0.0
  %1601 = vmatprep.subr.mxu0 0.0
  %1602 = vmatpush1.msra.mxu0 0.0
  %1603 = vmatprep.subr.mxu0 0.0
  %1604 = vmatpush1.msra.mxu0 0.0
  %1605 = vmatprep.subr.mxu0 0.0
  %1606 = vmatpush1.msra.mxu0 0.0
  %1607 = vmatprep.subr.mxu0 0.0
  %1608 = vmatpush1.msra.mxu0 0.0
  %1609 = vmatprep.subr.mxu0 0.0
  %1610 = vmatpush1.msra.mxu0 0.0
  %1611 = vmatprep.subr.mxu0 0.0
  %1612 = vmatpush1.msra.mxu0 0.0
  %1613 = vmatprep.subr.mxu0 0.0
  %1614 = vmatpush1.msra.mxu0 0.0
  %1615 = vmatprep.subr.mxu0 0.0
  %1616 = vmatpush1.msra.mxu0 0.0
  %1617 = vmatprep.subr.mxu0 0.0
  %1618 = vmatpush1.msra.mxu0 0.0
  %1619 = vmatprep.subr.mxu0 0.0
  %1620 = vmatpush1.msra.mxu0 0.0
  %1621 = vmatprep.subr.mxu0 0.0
  %1622 = vmatpush1.msra.mxu0 0.0
  %1623 = vmatprep.subr.mxu0 0.0
  %1624 = vmatpush1.msra.mxu0 %v1588
  %1625 = vmatprep.subr.mxu0 0.0
  %1626 = vmatpush1.msra.mxu0 %v1587
  %1627 = vmatprep.subr.mxu0 0.0
  %1628 = vmatpush1.msra.mxu0 %v1586
  %1629 = vmatprep.subr.mxu0 0.0
  %1630 = vmatpush1.msra.mxu0 %v1585
  %1631 = vmatprep.subr.mxu0 0.0
  %1632 = vmatpush2.msra.mxu0 0.0
  %1633 = vmatprep.subr.mxu0 0.0
  %1634 = vmatpush2.msra.mxu0 0.0
  %1635 = vmatprep.subr.mxu0 0.0
  %1636 = vmatpush2.msra.mxu0 0.0
  %1637 = vmatprep.subr.mxu0 0.0
  %1638 = vmatpush2.msra.mxu0 0.0
  %1639 = vmatprep.subr.mxu0 0.0
  %1640 = vmatpush2.msra.mxu0 0.0
  %1641 = vmatprep.subr.mxu0 0.0
  %1642 = vmatpush2.msra.mxu0 0.0
  %1643 = vmatprep.subr.mxu0 0.0
  %1644 = vmatpush2.msra.mxu0 0.0
  %1645 = vmatprep.subr.mxu0 0.0
  %1646 = vmatpush2.msra.mxu0 0.0
  %1647 = vmatprep.subr.mxu0 0.0
  %1648 = vmatpush2.msra.mxu0 0.0
  %1649 = vmatprep.subr.mxu0 0.0
  %1650 = vmatpush2.msra.mxu0 0.0
  %1651 = vmatprep.subr.mxu0 0.0
  %1652 = vmatpush2.msra.mxu0 0.0
  %1653 = vmatprep.subr.mxu0 0.0
  %1654 = vmatpush2.msra.mxu0 0.0
  %1655 = vmatprep.subr.mxu0 0.0
  %1656 = vmatpush2.msra.mxu0 0.0
  %1657 = vmatprep.subr.mxu0 0.0
  %1658 = vmatpush2.msra.mxu0 0.0
  %1659 = vmatprep.subr.mxu0 0.0
  %1660 = vmatpush2.msra.mxu0 0.0
  %1661 = vmatprep.subr.mxu0 0.0
  %1662 = vmatpush2.msra.mxu0 0.0
  %1663 = vmatprep.mubr.f32.mxu0 0.0
  %1664 = vmatmul.mubr.f32.gmra.mxu0 %v1597
  %v1665 = vpop.f32.mrf.mxu0
  %v1666 = vadd.f32 %v1594, %v1665
  %v1667 = vpop.f32.mrf.mxu0
  %1668 = vdwg.mxu0
  %vm1669 = vcmask 39936
  %1670 = vst.msk [vmem:[%s13] sm:$0xff] %vm1669, %v1666
  // Predicated region
  $region54: #{attention_bigru_forward.1} parent=0 // pred_check
    _
  $region55: #{attention_bigru_forward.1} parent=0 // pred_check_branch
    %1672 = sbr.rel (0) target = $region57
  $region56: #{attention_bigru_forward.1} parent=0 // pred_region
    _
  $region57: #{attention_bigru_forward.1} parent=0 // pred_fallthru
    _
  // Predicated region
  $region58: #{attention_bigru_forward.1} parent=0 // pred_check
    _
  $region59: #{attention_bigru_forward.1} parent=0 // pred_check_branch
    %1674 = sbr.rel (0) target = $region61
  $region60: #{attention_bigru_forward.1} parent=0 // pred_region
    _
  $region61: #{attention_bigru_forward.1} parent=0 // pred_fallthru
    _

</llo_original>
